<compile_context>
chip_gen: v7x
topology: tpu7x:2x2x1
jax: 0.10.0
libtpu: 0.0.40
codegen_flags: <defaults>
</compile_context>

<pallas_src>
import functools
import math

import jax
import jax.numpy as jnp
from jax.experimental import pallas as pl
from jax.experimental.pallas import tpu as pltpu


# ----------------------------------------------------------------------------
# Kernel 1: tiled linear projection   y = x @ w + b
# ----------------------------------------------------------------------------
def linear_kernel(x_ref, w_ref, b_ref, o_ref, acc_ref):
    k = pl.program_id(2)

    @pl.when(k == 0)
    def _():
        acc_ref[...] = jnp.zeros_like(acc_ref)

    acc_ref[...] += jnp.dot(
        x_ref[...], w_ref[...], preferred_element_type=jnp.float32
    )

    @pl.when(k == pl.num_programs(2) - 1)
    def _():
        o_ref[...] = (acc_ref[...] + b_ref[...]).astype(o_ref.dtype)


def _pick_tile(size, cap):
    # Use the cap when it divides the dim exactly (keeps every block
    # (8,128)-aligned and edge-free); otherwise fall back to the full dim,
    # which Pallas always accepts.
    return cap if size % cap == 0 else size


def pallas_linear(x2d, w_t, b, *, tm_cap=256, tn_cap=256, tk_cap=512):
    """x2d: (M, K), w_t: (K, N) (= PyTorch weight transposed), b: (1, N) -> f32 (M, N)."""
    M, K = x2d.shape
    N = w_t.shape[1]
    tm = _pick_tile(M, tm_cap)
    tn = _pick_tile(N, tn_cap)
    tk = _pick_tile(K, tk_cap)
    return pl.pallas_call(
        linear_kernel,
        out_shape=jax.ShapeDtypeStruct((M, N), jnp.float32),
        grid_spec=pltpu.PrefetchScalarGridSpec(
            num_scalar_prefetch=0,
            grid=(M // tm, N // tn, K // tk),
            in_specs=[
                pl.BlockSpec((tm, tk), lambda i, j, k: (i, k)),
                pl.BlockSpec((tk, tn), lambda i, j, k: (k, j)),
                pl.BlockSpec((1, tn), lambda i, j, k: (0, j)),
            ],
            out_specs=pl.BlockSpec((tm, tn), lambda i, j, k: (i, j)),
            scratch_shapes=[pltpu.VMEM((tm, tn), jnp.float32)],
        ),
        compiler_params=pltpu.CompilerParams(
            dimension_semantics=("parallel", "parallel", "arbitrary")
        ),
    )(x2d, w_t, b)


# ----------------------------------------------------------------------------
# Kernel 2: scaled-dot-product attention, one batch element (all heads) per step
# ----------------------------------------------------------------------------
def mha_attn_kernel(q_ref, k_ref, v_ref, val_ref, score_ref, *,
                    num_head, d_k, scale, compute_dtype):
    # Per-batch blocks: q/k/v/val are (T, num_head*d_k); score is (num_head, T, T).
    for h in range(num_head):                      # static unroll over heads
        sl = slice(h * d_k, (h + 1) * d_k)
        qh = (q_ref[:, sl] * scale).astype(compute_dtype)   # fold 1/sqrt(d_k) into q
        kh = k_ref[:, sl].astype(compute_dtype)
        vh = v_ref[:, sl].astype(compute_dtype)

        # score = (q / sqrt(d_k)) @ k^T  -- contract last dims, no explicit .T
        s = jax.lax.dot_general(qh, kh, (((1,), (1,)), ((), ())),
                                preferred_element_type=jnp.float32)
        s = jnp.maximum(s, -6000.0)                # torch.clamp_min(score, -6000)

        # numerically stable softmax, f32 math; approx reciprocal -> EUP slot
        m = jnp.max(s, axis=-1, keepdims=True)
        e = jnp.exp(s - m)
        p = e * pl.reciprocal(jnp.sum(e, axis=-1, keepdims=True), approx=True)

        score_ref[h, :, :] = p
        val_ref[:, sl] = jax.lax.dot_general(
            p.astype(compute_dtype), vh, (((1,), (0,)), ((), ())),
            preferred_element_type=jnp.float32)


def pallas_attention(qp, kp, vp, *, num_head, d_k, compute_dtype):
    """qp/kp/vp: (B, T, num_head*d_k) -> value (B, T, num_head*d_k), score (B, H, T, T)."""
    B, T, dim = qp.shape
    kern = functools.partial(
        mha_attn_kernel, num_head=num_head, d_k=d_k,
        scale=1.0 / math.sqrt(d_k), compute_dtype=compute_dtype)
    return pl.pallas_call(
        kern,
        out_shape=(
            jax.ShapeDtypeStruct((B, T, dim), jnp.float32),
            jax.ShapeDtypeStruct((B, num_head, T, T), jnp.float32),
        ),
        grid=(B,),
        in_specs=[
            pl.BlockSpec((None, T, dim), lambda b: (b, 0, 0)),
            pl.BlockSpec((None, T, dim), lambda b: (b, 0, 0)),
            pl.BlockSpec((None, T, dim), lambda b: (b, 0, 0)),
        ],
        out_specs=(
            pl.BlockSpec((None, T, dim), lambda b: (b, 0, 0)),
            pl.BlockSpec((None, num_head, T, T), lambda b: (b, 0, 0, 0)),
        ),
        compiler_params=pltpu.CompilerParams(dimension_semantics=("parallel",)),
    )(qp, kp, vp)


# ----------------------------------------------------------------------------
# Module: parameter init + forward
# ----------------------------------------------------------------------------
def init_params(key, dim):
    """Deterministic init mimicking nn.Linear (uniform +- 1/sqrt(dim))."""
    bound = 1.0 / math.sqrt(dim)
    keys = jax.random.split(key, 8)
    params = {}
    for i, name in enumerate(["q", "k", "v", "out"]):
        w = jax.random.uniform(keys[2 * i], (dim, dim), jnp.float32, -bound, bound)
        b = jax.random.uniform(keys[2 * i + 1], (dim,), jnp.float32, -bound, bound)
        params[name] = {"w": w, "b": b}  # PyTorch-style (out_features, in_features)
    return params


@functools.partial(jax.jit, static_argnames=("num_head", "fuse_qkv", "compute_dtype"))
def multi_head_attention_forward(params, q, k, v, *, num_head,
                                 fuse_qkv=False, compute_dtype=jnp.bfloat16):
    """Matches MultiHeadAttention.forward (eval mode, mask=None).

    compute_dtype : dtype fed to the MXU (bf16 fast path, f32 accumulation);
                    float32 reproduces the PyTorch numerics.
    fuse_qkv      : set True only for self-attention (q, k, v the same tensor);
                    the three projection weights are concatenated into a single
                    (dim, 3*dim) matmul so the input is read from HBM once.
    """
    B, T, dim = q.shape
    assert dim % num_head == 0
    d_k = dim // num_head
    cd = compute_dtype

    if fuse_qkv:
        w_qkv = jnp.concatenate(
            [params[n]["w"].T for n in ("q", "k", "v")], axis=1).astype(cd)
        b_qkv = jnp.concatenate(
            [params[n]["b"] for n in ("q", "k", "v")]).reshape(1, 3 * dim)
        y = pallas_linear(q.reshape(B * T, dim).astype(cd), w_qkv, b_qkv)
        qp = y[:, 0 * dim:1 * dim].reshape(B, T, dim)
        kp = y[:, 1 * dim:2 * dim].reshape(B, T, dim)
        vp = y[:, 2 * dim:3 * dim].reshape(B, T, dim)
    else:
        def proj(x, name):
            p = params[name]
            return pallas_linear(
                x.reshape(B * T, dim).astype(cd),
                p["w"].T.astype(cd),
                p["b"].reshape(1, dim),
            ).reshape(B, T, dim)
        qp, kp, vp = proj(q, "q"), proj(k, "k"), proj(v, "v")

    # Heads are sliced inside the kernel -> no host-side transposes at all.
    value, score = pallas_attention(qp, kp, vp, num_head=num_head, d_k=d_k,
                                    compute_dtype=cd)

    out = pallas_linear(
        value.reshape(B * T, dim).astype(cd),
        params["out"]["w"].T.astype(cd),
        params["out"]["b"].reshape(1, dim),
    ).reshape(B, T, dim)
    return out, score


# ----------------------------------------------------------------------------
# Pure-JAX reference (mirrors the PyTorch module; with compute_dtype=float32 it
# is exactly the module's forward, with bfloat16 it mirrors the kernels' MXU
# dtype so tolerances can stay tight).
# ----------------------------------------------------------------------------
def reference_forward(params, q, k, v, *, num_head, compute_dtype=jnp.bfloat16):
    B, T, dim = q.shape
    d_k = dim // num_head
    cd = compute_dtype
    scale = 1.0 / math.sqrt(d_k)

    def lin(x, p):
        y = jnp.dot(x.reshape(-1, dim).astype(cd), p["w"].T.astype(cd),
                    preferred_element_type=jnp.float32)
        return (y + p["b"]).reshape(B, T, dim)

    qp = lin(q, params["q"]).reshape(B, T, num_head, d_k).transpose(0, 2, 1, 3)
    kp = lin(k, params["k"]).reshape(B, T, num_head, d_k).transpose(0, 2, 1, 3)
    vp = lin(v, params["v"]).reshape(B, T, num_head, d_k).transpose(0, 2, 1, 3)

    s = jnp.einsum("bhtd,bhsd->bhts", (qp * scale).astype(cd), kp.astype(cd),
                   preferred_element_type=jnp.float32)
    s = jnp.maximum(s, -6000.0)
    p = jax.nn.softmax(s, axis=-1)
    val = jnp.einsum("bhts,bhsd->bhtd", p.astype(cd), vp.astype(cd),
                     preferred_element_type=jnp.float32)
    val = val.transpose(0, 2, 1, 3).reshape(B, T, dim)
    out = (jnp.dot(val.reshape(-1, dim).astype(cd),
                   params["out"]["w"].T.astype(cd),
                   preferred_element_type=jnp.float32)
           + params["out"]["b"]).reshape(B, T, dim)
    return out, p


if __name__ == "__main__":
    key = jax.random.PRNGKey(0)
    kparam, kx, kq, kk, kv = jax.random.split(key, 5)

    # --- small config ------------------------------------------------------
    B, T, dim, num_head = 2, 8, 32, 4
    params = init_params(kparam, dim)
    x = jax.random.normal(kx, (B, T, dim), jnp.float32)
    q = jax.random.normal(kq, (B, T, dim), jnp.float32)
    k = jax.random.normal(kk, (B, T, dim), jnp.float32)
    v = jax.random.normal(kv, (B, T, dim), jnp.float32)

    def check(name, got, want, atol=5e-3, rtol=5e-3):
        assert got.shape == want.shape, (name, got.shape, want.shape)
        err = float(jnp.max(jnp.abs(got - want)))
        assert jnp.allclose(got, want, atol=atol, rtol=rtol), (name, err)

    # (A) self-attention, fused QKV projection, bf16 MXU operands
    val_a, sc_a = multi_head_attention_forward(
        params, x, x, x, num_head=num_head, fuse_qkv=True,
        compute_dtype=jnp.bfloat16)
    jax.block_until_ready((val_a, sc_a))
    rv, rs = reference_forward(params, x, x, x, num_head=num_head,
                               compute_dtype=jnp.bfloat16)
    check("fused/value", val_a, rv)
    check("fused/score", sc_a, rs)

    # (B) distinct q/k/v (cross-attention style), separate projections, bf16
    val_b, sc_b = multi_head_attention_forward(
        params, q, k, v, num_head=num_head, fuse_qkv=False,
        compute_dtype=jnp.bfloat16)
    jax.block_until_ready((val_b, sc_b))
    rv, rs = reference_forward(params, q, k, v, num_head=num_head,
                               compute_dtype=jnp.bfloat16)
    check("unfused/value", val_b, rv)
    check("unfused/score", sc_b, rs)

    # (C) all-f32 path -> PyTorch-exact semantics (up to accumulation order and
    #     the approximate softmax reciprocal)
    val_c, sc_c = multi_head_attention_forward(
        params, q, k, v, num_head=num_head, fuse_qkv=False,
        compute_dtype=jnp.float32)
    jax.block_until_ready((val_c, sc_c))
    rv, rs = reference_forward(params, q, k, v, num_head=num_head,
                               compute_dtype=jnp.float32)
    check("f32/value", val_c, rv)
    check("f32/score", sc_c, rs)

    # (D) larger config exercising the tiled matmul grid: multiple N tiles and
    #     a 2-step K reduction through the VMEM accumulator, lane-wide heads.
    B2, T2, dim2, nh2 = 2, 64, 1024, 8
    params2 = init_params(jax.random.PRNGKey(1), dim2)
    x2 = jax.random.normal(jax.random.PRNGKey(2), (B2, T2, dim2), jnp.float32)
    val_d, sc_d = multi_head_attention_forward(
        params2, x2, x2, x2, num_head=nh2, fuse_qkv=True,
        compute_dtype=jnp.bfloat16)
    jax.block_until_ready((val_d, sc_d))
    rv, rs = reference_forward(params2, x2, x2, x2, num_head=nh2,
                               compute_dtype=jnp.bfloat16)
    check("tiled/value", val_d, rv)
    check("tiled/score", sc_d, rs)

    print("KERNEL_OK")
</pallas_src>

<mosaic_0001>
module attributes {stable_mosaic.version = 11 : i64} {
  func.func @mha_attn_kernel(%arg0: i32, %arg1: memref<1x8x32xf32, #tpu.memory_space<vmem>>, %arg2: memref<1x8x32xf32, #tpu.memory_space<vmem>>, %arg3: memref<1x8x32xf32, #tpu.memory_space<vmem>>, %arg4: memref<1x8x32xf32, #tpu.memory_space<vmem>>, %arg5: memref<1x4x8x8xf32, #tpu.memory_space<vmem>>) attributes {dimension_semantics = [#tpu.dimension_semantics<parallel>], iteration_bounds = array<i64: 2>, scalar_prefetch = 0 : i64, scratch_operands = 0 : i64, tpu.core_type = #tpu.core_type<tc>, window_params = [{transform_indices = @transform_0, window_bounds = array<i64: 1, 8, 32>}, {transform_indices = @transform_1, window_bounds = array<i64: 1, 8, 32>}, {transform_indices = @transform_2, window_bounds = array<i64: 1, 8, 32>}, {transform_indices = @transform_3, window_bounds = array<i64: 1, 8, 32>}, {transform_indices = @transform_4, window_bounds = array<i64: 1, 4, 8, 8>}]} {
    %c0 = arith.constant 0 : index
    %c0_0 = arith.constant 0 : index
    %c0_1 = arith.constant 0 : index
    %0 = vector.load %arg1[%c0, %c0_0, %c0_1] : memref<1x8x32xf32, #tpu.memory_space<vmem>>, vector<1x8x8xf32>
    %1 = vector.shape_cast %0 : vector<1x8x8xf32> to vector<8x8xf32>
    %cst = arith.constant 0.353553385 : f32
    %2 = vector.broadcast %cst : f32 to vector<8x8xf32>
    %3 = arith.mulf %1, %2 : vector<8x8xf32>
    %4 = arith.truncf %3 : vector<8x8xf32> to vector<8x8xbf16>
    %c0_2 = arith.constant 0 : index
    %c0_3 = arith.constant 0 : index
    %c0_4 = arith.constant 0 : index
    %5 = vector.load %arg2[%c0_2, %c0_3, %c0_4] : memref<1x8x32xf32, #tpu.memory_space<vmem>>, vector<1x8x8xf32>
    %6 = vector.shape_cast %5 : vector<1x8x8xf32> to vector<8x8xf32>
    %7 = arith.truncf %6 : vector<8x8xf32> to vector<8x8xbf16>
    %c0_5 = arith.constant 0 : index
    %c0_6 = arith.constant 0 : index
    %c0_7 = arith.constant 0 : index
    %8 = vector.load %arg3[%c0_5, %c0_6, %c0_7] : memref<1x8x32xf32, #tpu.memory_space<vmem>>, vector<1x8x8xf32>
    %9 = vector.shape_cast %8 : vector<1x8x8xf32> to vector<8x8xf32>
    %10 = arith.truncf %9 : vector<8x8xf32> to vector<8x8xbf16>
    %cst_8 = arith.constant dense<0.000000e+00> : vector<8x8xf32>
    %11 = tpu.matmul %4, %7, %cst_8 {dimension_numbers = #tpu.dot_dimension_numbers<[1], [1], [0], [0], [0, 0, 1, 0], [], []>} : vector<8x8xbf16>, vector<8x8xbf16>, vector<8x8xf32> -> vector<8x8xf32>
    %cst_9 = arith.constant -6.000000e+03 : f32
    %12 = vector.broadcast %cst_9 : f32 to vector<8x8xf32>
    %13 = arith.maximumf %11, %12 : vector<8x8xf32>
    %cst_10 = arith.constant dense<0xFF800000> : vector<8xf32>
    %14 = vector.multi_reduction <maximumf>, %13, %cst_10 [1] : vector<8x8xf32> to vector<8xf32>
    %15 = vector.shape_cast %14 : vector<8xf32> to vector<8x1xf32>
    %16 = vector.broadcast %15 : vector<8x1xf32> to vector<8x8xf32>
    %17 = arith.subf %13, %16 : vector<8x8xf32>
    %18 = math.exp %17 : vector<8x8xf32>
    %cst_11 = arith.constant dense<0.000000e+00> : vector<8xf32>
    %19 = vector.multi_reduction <add>, %18, %cst_11 [1] : vector<8x8xf32> to vector<8xf32>
    %20 = vector.shape_cast %19 : vector<8xf32> to vector<8x1xf32>
    %21 = tpu.reciprocal %20 {approx = true} : vector<8x1xf32> -> vector<8x1xf32>
    %22 = vector.broadcast %21 : vector<8x1xf32> to vector<8x8xf32>
    %23 = arith.mulf %18, %22 : vector<8x8xf32>
    %c0_12 = arith.constant 0 : index
    %c0_13 = arith.constant 0 : index
    %c0_14 = arith.constant 0 : index
    %c0_15 = arith.constant 0 : index
    %24 = vector.load %arg5[%c0_12, %c0_13, %c0_14, %c0_15] : memref<1x4x8x8xf32, #tpu.memory_space<vmem>>, vector<1x1x8x8xf32>
    %25 = vector.shape_cast %24 : vector<1x1x8x8xf32> to vector<8x8xf32>
    %26 = vector.shape_cast %23 : vector<8x8xf32> to vector<1x1x8x8xf32>
    tpu.vector_store %arg5[%c0_12, %c0_13, %c0_14, %c0_15], %26 {strides = array<i32>} : memref<1x4x8x8xf32, #tpu.memory_space<vmem>>, vector<1x1x8x8xf32>,
    %27 = arith.truncf %23 : vector<8x8xf32> to vector<8x8xbf16>
    %cst_16 = arith.constant dense<0.000000e+00> : vector<8x8xf32>
    %28 = tpu.matmul %27, %10, %cst_16 {dimension_numbers = #tpu.dot_dimension_numbers<[1], [0], [0], [1], [0, 0, 1, 1], [], []>} : vector<8x8xbf16>, vector<8x8xbf16>, vector<8x8xf32> -> vector<8x8xf32>
    %c0_17 = arith.constant 0 : index
    %c0_18 = arith.constant 0 : index
    %c0_19 = arith.constant 0 : index
    %29 = vector.load %arg4[%c0_17, %c0_18, %c0_19] : memref<1x8x32xf32, #tpu.memory_space<vmem>>, vector<1x8x8xf32>
    %30 = vector.shape_cast %29 : vector<1x8x8xf32> to vector<8x8xf32>
    %31 = vector.shape_cast %28 : vector<8x8xf32> to vector<1x8x8xf32>
    tpu.vector_store %arg4[%c0_17, %c0_18, %c0_19], %31 {strides = array<i32>} : memref<1x8x32xf32, #tpu.memory_space<vmem>>, vector<1x8x8xf32>,
    %c0_20 = arith.constant 0 : index
    %c0_21 = arith.constant 0 : index
    %c8 = arith.constant 8 : index
    %32 = vector.load %arg1[%c0_20, %c0_21, %c8] : memref<1x8x32xf32, #tpu.memory_space<vmem>>, vector<1x8x8xf32>
    %33 = vector.shape_cast %32 : vector<1x8x8xf32> to vector<8x8xf32>
    %cst_22 = arith.constant 0.353553385 : f32
    %34 = vector.broadcast %cst_22 : f32 to vector<8x8xf32>
    %35 = arith.mulf %33, %34 : vector<8x8xf32>
    %36 = arith.truncf %35 : vector<8x8xf32> to vector<8x8xbf16>
    %c0_23 = arith.constant 0 : index
    %c0_24 = arith.constant 0 : index
    %c8_25 = arith.constant 8 : index
    %37 = vector.load %arg2[%c0_23, %c0_24, %c8_25] : memref<1x8x32xf32, #tpu.memory_space<vmem>>, vector<1x8x8xf32>
    %38 = vector.shape_cast %37 : vector<1x8x8xf32> to vector<8x8xf32>
    %39 = arith.truncf %38 : vector<8x8xf32> to vector<8x8xbf16>
    %c0_26 = arith.constant 0 : index
    %c0_27 = arith.constant 0 : index
    %c8_28 = arith.constant 8 : index
    %40 = vector.load %arg3[%c0_26, %c0_27, %c8_28] : memref<1x8x32xf32, #tpu.memory_space<vmem>>, vector<1x8x8xf32>
    %41 = vector.shape_cast %40 : vector<1x8x8xf32> to vector<8x8xf32>
    %42 = arith.truncf %41 : vector<8x8xf32> to vector<8x8xbf16>
    %cst_29 = arith.constant dense<0.000000e+00> : vector<8x8xf32>
    %43 = tpu.matmul %36, %39, %cst_29 {dimension_numbers = #tpu.dot_dimension_numbers<[1], [1], [0], [0], [0, 0, 1, 0], [], []>} : vector<8x8xbf16>, vector<8x8xbf16>, vector<8x8xf32> -> vector<8x8xf32>
    %cst_30 = arith.constant -6.000000e+03 : f32
    %44 = vector.broadcast %cst_30 : f32 to vector<8x8xf32>
    %45 = arith.maximumf %43, %44 : vector<8x8xf32>
    %cst_31 = arith.constant dense<0xFF800000> : vector<8xf32>
    %46 = vector.multi_reduction <maximumf>, %45, %cst_31 [1] : vector<8x8xf32> to vector<8xf32>
    %47 = vector.shape_cast %46 : vector<8xf32> to vector<8x1xf32>
    %48 = vector.broadcast %47 : vector<8x1xf32> to vector<8x8xf32>
    %49 = arith.subf %45, %48 : vector<8x8xf32>
    %50 = math.exp %49 : vector<8x8xf32>
    %cst_32 = arith.constant dense<0.000000e+00> : vector<8xf32>
    %51 = vector.multi_reduction <add>, %50, %cst_32 [1] : vector<8x8xf32> to vector<8xf32>
    %52 = vector.shape_cast %51 : vector<8xf32> to vector<8x1xf32>
    %53 = tpu.reciprocal %52 {approx = true} : vector<8x1xf32> -> vector<8x1xf32>
    %54 = vector.broadcast %53 : vector<8x1xf32> to vector<8x8xf32>
    %55 = arith.mulf %50, %54 : vector<8x8xf32>
    %c0_33 = arith.constant 0 : index
    %c1 = arith.constant 1 : index
    %c0_34 = arith.constant 0 : index
    %c0_35 = arith.constant 0 : index
    %56 = vector.load %arg5[%c0_33, %c1, %c0_34, %c0_35] : memref<1x4x8x8xf32, #tpu.memory_space<vmem>>, vector<1x1x8x8xf32>
    %57 = vector.shape_cast %56 : vector<1x1x8x8xf32> to vector<8x8xf32>
    %58 = vector.shape_cast %55 : vector<8x8xf32> to vector<1x1x8x8xf32>
    tpu.vector_store %arg5[%c0_33, %c1, %c0_34, %c0_35], %58 {strides = array<i32>} : memref<1x4x8x8xf32, #tpu.memory_space<vmem>>, vector<1x1x8x8xf32>,
    %59 = arith.truncf %55 : vector<8x8xf32> to vector<8x8xbf16>
    %cst_36 = arith.constant dense<0.000000e+00> : vector<8x8xf32>
    %60 = tpu.matmul %59, %42, %cst_36 {dimension_numbers = #tpu.dot_dimension_numbers<[1], [0], [0], [1], [0, 0, 1, 1], [], []>} : vector<8x8xbf16>, vector<8x8xbf16>, vector<8x8xf32> -> vector<8x8xf32>
    %c0_37 = arith.constant 0 : index
    %c0_38 = arith.constant 0 : index
    %c8_39 = arith.constant 8 : index
    %61 = vector.load %arg4[%c0_37, %c0_38, %c8_39] : memref<1x8x32xf32, #tpu.memory_space<vmem>>, vector<1x8x8xf32>
    %62 = vector.shape_cast %61 : vector<1x8x8xf32> to vector<8x8xf32>
    %63 = vector.shape_cast %60 : vector<8x8xf32> to vector<1x8x8xf32>
    tpu.vector_store %arg4[%c0_37, %c0_38, %c8_39], %63 {strides = array<i32>} : memref<1x8x32xf32, #tpu.memory_space<vmem>>, vector<1x8x8xf32>,
    %c0_40 = arith.constant 0 : index
    %c0_41 = arith.constant 0 : index
    %c16 = arith.constant 16 : index
    %64 = vector.load %arg1[%c0_40, %c0_41, %c16] : memref<1x8x32xf32, #tpu.memory_space<vmem>>, vector<1x8x8xf32>
    %65 = vector.shape_cast %64 : vector<1x8x8xf32> to vector<8x8xf32>
    %cst_42 = arith.constant 0.353553385 : f32
    %66 = vector.broadcast %cst_42 : f32 to vector<8x8xf32>
    %67 = arith.mulf %65, %66 : vector<8x8xf32>
    %68 = arith.truncf %67 : vector<8x8xf32> to vector<8x8xbf16>
    %c0_43 = arith.constant 0 : index
    %c0_44 = arith.constant 0 : index
    %c16_45 = arith.constant 16 : index
    %69 = vector.load %arg2[%c0_43, %c0_44, %c16_45] : memref<1x8x32xf32, #tpu.memory_space<vmem>>, vector<1x8x8xf32>
    %70 = vector.shape_cast %69 : vector<1x8x8xf32> to vector<8x8xf32>
    %71 = arith.truncf %70 : vector<8x8xf32> to vector<8x8xbf16>
    %c0_46 = arith.constant 0 : index
    %c0_47 = arith.constant 0 : index
    %c16_48 = arith.constant 16 : index
    %72 = vector.load %arg3[%c0_46, %c0_47, %c16_48] : memref<1x8x32xf32, #tpu.memory_space<vmem>>, vector<1x8x8xf32>
    %73 = vector.shape_cast %72 : vector<1x8x8xf32> to vector<8x8xf32>
    %74 = arith.truncf %73 : vector<8x8xf32> to vector<8x8xbf16>
    %cst_49 = arith.constant dense<0.000000e+00> : vector<8x8xf32>
    %75 = tpu.matmul %68, %71, %cst_49 {dimension_numbers = #tpu.dot_dimension_numbers<[1], [1], [0], [0], [0, 0, 1, 0], [], []>} : vector<8x8xbf16>, vector<8x8xbf16>, vector<8x8xf32> -> vector<8x8xf32>
    %cst_50 = arith.constant -6.000000e+03 : f32
    %76 = vector.broadcast %cst_50 : f32 to vector<8x8xf32>
    %77 = arith.maximumf %75, %76 : vector<8x8xf32>
    %cst_51 = arith.constant dense<0xFF800000> : vector<8xf32>
    %78 = vector.multi_reduction <maximumf>, %77, %cst_51 [1] : vector<8x8xf32> to vector<8xf32>
    %79 = vector.shape_cast %78 : vector<8xf32> to vector<8x1xf32>
    %80 = vector.broadcast %79 : vector<8x1xf32> to vector<8x8xf32>
    %81 = arith.subf %77, %80 : vector<8x8xf32>
    %82 = math.exp %81 : vector<8x8xf32>
    %cst_52 = arith.constant dense<0.000000e+00> : vector<8xf32>
    %83 = vector.multi_reduction <add>, %82, %cst_52 [1] : vector<8x8xf32> to vector<8xf32>
    %84 = vector.shape_cast %83 : vector<8xf32> to vector<8x1xf32>
    %85 = tpu.reciprocal %84 {approx = true} : vector<8x1xf32> -> vector<8x1xf32>
    %86 = vector.broadcast %85 : vector<8x1xf32> to vector<8x8xf32>
    %87 = arith.mulf %82, %86 : vector<8x8xf32>
    %c0_53 = arith.constant 0 : index
    %c2 = arith.constant 2 : index
    %c0_54 = arith.constant 0 : index
    %c0_55 = arith.constant 0 : index
    %88 = vector.load %arg5[%c0_53, %c2, %c0_54, %c0_55] : memref<1x4x8x8xf32, #tpu.memory_space<vmem>>, vector<1x1x8x8xf32>
    %89 = vector.shape_cast %88 : vector<1x1x8x8xf32> to vector<8x8xf32>
    %90 = vector.shape_cast %87 : vector<8x8xf32> to vector<1x1x8x8xf32>
    tpu.vector_store %arg5[%c0_53, %c2, %c0_54, %c0_55], %90 {strides = array<i32>} : memref<1x4x8x8xf32, #tpu.memory_space<vmem>>, vector<1x1x8x8xf32>,
    %91 = arith.truncf %87 : vector<8x8xf32> to vector<8x8xbf16>
    %cst_56 = arith.constant dense<0.000000e+00> : vector<8x8xf32>
    %92 = tpu.matmul %91, %74, %cst_56 {dimension_numbers = #tpu.dot_dimension_numbers<[1], [0], [0], [1], [0, 0, 1, 1], [], []>} : vector<8x8xbf16>, vector<8x8xbf16>, vector<8x8xf32> -> vector<8x8xf32>
    %c0_57 = arith.constant 0 : index
    %c0_58 = arith.constant 0 : index
    %c16_59 = arith.constant 16 : index
    %93 = vector.load %arg4[%c0_57, %c0_58, %c16_59] : memref<1x8x32xf32, #tpu.memory_space<vmem>>, vector<1x8x8xf32>
    %94 = vector.shape_cast %93 : vector<1x8x8xf32> to vector<8x8xf32>
    %95 = vector.shape_cast %92 : vector<8x8xf32> to vector<1x8x8xf32>
    tpu.vector_store %arg4[%c0_57, %c0_58, %c16_59], %95 {strides = array<i32>} : memref<1x8x32xf32, #tpu.memory_space<vmem>>, vector<1x8x8xf32>,
    %c0_60 = arith.constant 0 : index
    %c0_61 = arith.constant 0 : index
    %c24 = arith.constant 24 : index
    %96 = vector.load %arg1[%c0_60, %c0_61, %c24] : memref<1x8x32xf32, #tpu.memory_space<vmem>>, vector<1x8x8xf32>
    %97 = vector.shape_cast %96 : vector<1x8x8xf32> to vector<8x8xf32>
    %cst_62 = arith.constant 0.353553385 : f32
    %98 = vector.broadcast %cst_62 : f32 to vector<8x8xf32>
    %99 = arith.mulf %97, %98 : vector<8x8xf32>
    %100 = arith.truncf %99 : vector<8x8xf32> to vector<8x8xbf16>
    %c0_63 = arith.constant 0 : index
    %c0_64 = arith.constant 0 : index
    %c24_65 = arith.constant 24 : index
    %101 = vector.load %arg2[%c0_63, %c0_64, %c24_65] : memref<1x8x32xf32, #tpu.memory_space<vmem>>, vector<1x8x8xf32>
    %102 = vector.shape_cast %101 : vector<1x8x8xf32> to vector<8x8xf32>
    %103 = arith.truncf %102 : vector<8x8xf32> to vector<8x8xbf16>
    %c0_66 = arith.constant 0 : index
    %c0_67 = arith.constant 0 : index
    %c24_68 = arith.constant 24 : index
    %104 = vector.load %arg3[%c0_66, %c0_67, %c24_68] : memref<1x8x32xf32, #tpu.memory_space<vmem>>, vector<1x8x8xf32>
    %105 = vector.shape_cast %104 : vector<1x8x8xf32> to vector<8x8xf32>
    %106 = arith.truncf %105 : vector<8x8xf32> to vector<8x8xbf16>
    %cst_69 = arith.constant dense<0.000000e+00> : vector<8x8xf32>
    %107 = tpu.matmul %100, %103, %cst_69 {dimension_numbers = #tpu.dot_dimension_numbers<[1], [1], [0], [0], [0, 0, 1, 0], [], []>} : vector<8x8xbf16>, vector<8x8xbf16>, vector<8x8xf32> -> vector<8x8xf32>
    %cst_70 = arith.constant -6.000000e+03 : f32
    %108 = vector.broadcast %cst_70 : f32 to vector<8x8xf32>
    %109 = arith.maximumf %107, %108 : vector<8x8xf32>
    %cst_71 = arith.constant dense<0xFF800000> : vector<8xf32>
    %110 = vector.multi_reduction <maximumf>, %109, %cst_71 [1] : vector<8x8xf32> to vector<8xf32>
    %111 = vector.shape_cast %110 : vector<8xf32> to vector<8x1xf32>
    %112 = vector.broadcast %111 : vector<8x1xf32> to vector<8x8xf32>
    %113 = arith.subf %109, %112 : vector<8x8xf32>
    %114 = math.exp %113 : vector<8x8xf32>
    %cst_72 = arith.constant dense<0.000000e+00> : vector<8xf32>
    %115 = vector.multi_reduction <add>, %114, %cst_72 [1] : vector<8x8xf32> to vector<8xf32>
    %116 = vector.shape_cast %115 : vector<8xf32> to vector<8x1xf32>
    %117 = tpu.reciprocal %116 {approx = true} : vector<8x1xf32> -> vector<8x1xf32>
    %118 = vector.broadcast %117 : vector<8x1xf32> to vector<8x8xf32>
    %119 = arith.mulf %114, %118 : vector<8x8xf32>
    %c0_73 = arith.constant 0 : index
    %c3 = arith.constant 3 : index
    %c0_74 = arith.constant 0 : index
    %c0_75 = arith.constant 0 : index
    %120 = vector.load %arg5[%c0_73, %c3, %c0_74, %c0_75] : memref<1x4x8x8xf32, #tpu.memory_space<vmem>>, vector<1x1x8x8xf32>
    %121 = vector.shape_cast %120 : vector<1x1x8x8xf32> to vector<8x8xf32>
    %122 = vector.shape_cast %119 : vector<8x8xf32> to vector<1x1x8x8xf32>
    tpu.vector_store %arg5[%c0_73, %c3, %c0_74, %c0_75], %122 {strides = array<i32>} : memref<1x4x8x8xf32, #tpu.memory_space<vmem>>, vector<1x1x8x8xf32>,
    %123 = arith.truncf %119 : vector<8x8xf32> to vector<8x8xbf16>
    %cst_76 = arith.constant dense<0.000000e+00> : vector<8x8xf32>
    %124 = tpu.matmul %123, %106, %cst_76 {dimension_numbers = #tpu.dot_dimension_numbers<[1], [0], [0], [1], [0, 0, 1, 1], [], []>} : vector<8x8xbf16>, vector<8x8xbf16>, vector<8x8xf32> -> vector<8x8xf32>
    %c0_77 = arith.constant 0 : index
    %c0_78 = arith.constant 0 : index
    %c24_79 = arith.constant 24 : index
    %125 = vector.load %arg4[%c0_77, %c0_78, %c24_79] : memref<1x8x32xf32, #tpu.memory_space<vmem>>, vector<1x8x8xf32>
    %126 = vector.shape_cast %125 : vector<1x8x8xf32> to vector<8x8xf32>
    %127 = vector.shape_cast %124 : vector<8x8xf32> to vector<1x8x8xf32>
    tpu.vector_store %arg4[%c0_77, %c0_78, %c24_79], %127 {strides = array<i32>} : memref<1x8x32xf32, #tpu.memory_space<vmem>>, vector<1x8x8xf32>,
    return
  }
  func.func @transform_0(%arg0: i32) -> (i32, i32, i32) {
    %c0_i32 = arith.constant 0 : i32
    %c0_i32_0 = arith.constant 0 : i32
    %c0_i32_1 = arith.constant 0 : i32
    return %arg0, %c0_i32, %c0_i32_0 : i32, i32, i32
  }
  func.func @transform_1(%arg0: i32) -> (i32, i32, i32) {
    %c0_i32 = arith.constant 0 : i32
    %c0_i32_0 = arith.constant 0 : i32
    %c0_i32_1 = arith.constant 0 : i32
    return %arg0, %c0_i32, %c0_i32_0 : i32, i32, i32
  }
  func.func @transform_2(%arg0: i32) -> (i32, i32, i32) {
    %c0_i32 = arith.constant 0 : i32
    %c0_i32_0 = arith.constant 0 : i32
    %c0_i32_1 = arith.constant 0 : i32
    return %arg0, %c0_i32, %c0_i32_0 : i32, i32, i32
  }
  func.func @transform_3(%arg0: i32) -> (i32, i32, i32) {
    %c0_i32 = arith.constant 0 : i32
    %c0_i32_0 = arith.constant 0 : i32
    %c0_i32_1 = arith.constant 0 : i32
    return %arg0, %c0_i32, %c0_i32_0 : i32, i32, i32
  }
  func.func @transform_4(%arg0: i32) -> (i32, i32, i32, i32) {
    %c0_i32 = arith.constant 0 : i32
    %c0_i32_0 = arith.constant 0 : i32
    %c0_i32_1 = arith.constant 0 : i32
    %c0_i32_2 = arith.constant 0 : i32
    return %arg0, %c0_i32, %c0_i32_0, %c0_i32_1 : i32, i32, i32, i32
  }
}

module attributes {stable_mosaic.version = 11 : i64} {
  func.func @linear_kernel(%arg0: i32, %arg1: i32, %arg2: i32, %arg3: memref<16x32xbf16, #tpu.memory_space<vmem>>, %arg4: memref<32x96xbf16, #tpu.memory_space<vmem>>, %arg5: memref<1x96xf32, #tpu.memory_space<vmem>>, %arg6: memref<16x96xf32, #tpu.memory_space<vmem>>, %arg7: memref<16x96xf32, #tpu.memory_space<vmem>>) attributes {dimension_semantics = [#tpu.dimension_semantics<parallel>, #tpu.dimension_semantics<parallel>, #tpu.dimension_semantics<arbitrary>], iteration_bounds = array<i64: 1, 1, 1>, scalar_prefetch = 0 : i64, scratch_operands = 1 : i64, tpu.core_type = #tpu.core_type<tc>, window_params = [{transform_indices = @transform_0, window_bounds = array<i64: 16, 32>}, {transform_indices = @transform_1, window_bounds = array<i64: 32, 96>}, {transform_indices = @transform_2, window_bounds = array<i64: 1, 96>}, {transform_indices = @transform_3, window_bounds = array<i64: 16, 96>}]} {
    %c0_i32 = arith.constant 0 : i32
    %0 = arith.cmpi eq, %arg2, %c0_i32 : i32
    %1 = arith.extui %0 : i1 to i32
    %c0_i32_0 = arith.constant 0 : i32
    %2 = arith.cmpi ne, %1, %c0_i32_0 : i32
    scf.if %2 {
      %cst_10 = arith.constant 0.000000e+00 : f32
      %12 = vector.broadcast %cst_10 : f32 to vector<16x96xf32>
      %c0_11 = arith.constant 0 : index
      %c0_12 = arith.constant 0 : index
      %13 = vector.load %arg7[%c0_11, %c0_12] : memref<16x96xf32, #tpu.memory_space<vmem>>, vector<16x96xf32>
      tpu.vector_store %arg7[%c0_11, %c0_12], %12 {strides = array<i32>} : memref<16x96xf32, #tpu.memory_space<vmem>>, vector<16x96xf32>,
    } else {
    }
    %c0 = arith.constant 0 : index
    %c0_1 = arith.constant 0 : index
    %3 = vector.load %arg7[%c0, %c0_1] : memref<16x96xf32, #tpu.memory_space<vmem>>, vector<16x96xf32>
    %c0_2 = arith.constant 0 : index
    %c0_3 = arith.constant 0 : index
    %4 = vector.load %arg3[%c0_2, %c0_3] : memref<16x32xbf16, #tpu.memory_space<vmem>>, vector<16x32xbf16>
    %c0_4 = arith.constant 0 : index
    %c0_5 = arith.constant 0 : index
    %5 = vector.load %arg4[%c0_4, %c0_5] : memref<32x96xbf16, #tpu.memory_space<vmem>>, vector<32x96xbf16>
    %cst = arith.constant dense<0.000000e+00> : vector<16x96xf32>
    %6 = tpu.matmul %4, %5, %cst {dimension_numbers = #tpu.dot_dimension_numbers<[1], [0], [0], [1], [0, 0, 1, 1], [], []>} : vector<16x32xbf16>, vector<32x96xbf16>, vector<16x96xf32> -> vector<16x96xf32>
    %7 = arith.addf %3, %6 : vector<16x96xf32>
    %c0_6 = arith.constant 0 : index
    %c0_7 = arith.constant 0 : index
    %8 = vector.load %arg7[%c0_6, %c0_7] : memref<16x96xf32, #tpu.memory_space<vmem>>, vector<16x96xf32>
    tpu.vector_store %arg7[%c0_6, %c0_7], %7 {strides = array<i32>} : memref<16x96xf32, #tpu.memory_space<vmem>>, vector<16x96xf32>,
    %c0_i32_8 = arith.constant 0 : i32
    %9 = arith.cmpi eq, %arg2, %c0_i32_8 : i32
    %10 = arith.extui %9 : i1 to i32
    %c0_i32_9 = arith.constant 0 : i32
    %11 = arith.cmpi ne, %10, %c0_i32_9 : i32
    scf.if %11 {
      %c0_10 = arith.constant 0 : index
      %c0_11 = arith.constant 0 : index
      %12 = vector.load %arg7[%c0_10, %c0_11] : memref<16x96xf32, #tpu.memory_space<vmem>>, vector<16x96xf32>
      %c0_12 = arith.constant 0 : index
      %c0_13 = arith.constant 0 : index
      %13 = vector.load %arg5[%c0_12, %c0_13] : memref<1x96xf32, #tpu.memory_space<vmem>>, vector<1x96xf32>
      %14 = vector.broadcast %13 : vector<1x96xf32> to vector<16x96xf32>
      %15 = arith.addf %12, %14 : vector<16x96xf32>
      %c0_14 = arith.constant 0 : index
      %c0_15 = arith.constant 0 : index
      %16 = vector.load %arg6[%c0_14, %c0_15] : memref<16x96xf32, #tpu.memory_space<vmem>>, vector<16x96xf32>
      tpu.vector_store %arg6[%c0_14, %c0_15], %15 {strides = array<i32>} : memref<16x96xf32, #tpu.memory_space<vmem>>, vector<16x96xf32>,
    } else {
    }
    return
  }
  func.func @transform_0(%arg0: i32, %arg1: i32, %arg2: i32) -> (i32, i32) {
    %c0_i32 = arith.constant 0 : i32
    return %arg0, %arg2 : i32, i32
  }
  func.func @transform_1(%arg0: i32, %arg1: i32, %arg2: i32) -> (i32, i32) {
    %c0_i32 = arith.constant 0 : i32
    return %arg2, %arg1 : i32, i32
  }
  func.func @transform_2(%arg0: i32, %arg1: i32, %arg2: i32) -> (i32, i32) {
    %c0_i32 = arith.constant 0 : i32
    %c0_i32_0 = arith.constant 0 : i32
    return %c0_i32, %arg1 : i32, i32
  }
  func.func @transform_3(%arg0: i32, %arg1: i32, %arg2: i32) -> (i32, i32) {
    %c0_i32 = arith.constant 0 : i32
    return %arg0, %arg1 : i32, i32
  }
}

module attributes {stable_mosaic.version = 11 : i64} {
  func.func @linear_kernel(%arg0: i32, %arg1: i32, %arg2: i32, %arg3: memref<16x32xbf16, #tpu.memory_space<vmem>>, %arg4: memref<32x32xbf16, #tpu.memory_space<vmem>>, %arg5: memref<1x32xf32, #tpu.memory_space<vmem>>, %arg6: memref<16x32xf32, #tpu.memory_space<vmem>>, %arg7: memref<16x32xf32, #tpu.memory_space<vmem>>) attributes {dimension_semantics = [#tpu.dimension_semantics<parallel>, #tpu.dimension_semantics<parallel>, #tpu.dimension_semantics<arbitrary>], iteration_bounds = array<i64: 1, 1, 1>, scalar_prefetch = 0 : i64, scratch_operands = 1 : i64, tpu.core_type = #tpu.core_type<tc>, window_params = [{transform_indices = @transform_0, window_bounds = array<i64: 16, 32>}, {transform_indices = @transform_1, window_bounds = array<i64: 32, 32>}, {transform_indices = @transform_2, window_bounds = array<i64: 1, 32>}, {transform_indices = @transform_3, window_bounds = array<i64: 16, 32>}]} {
    %c0_i32 = arith.constant 0 : i32
    %0 = arith.cmpi eq, %arg2, %c0_i32 : i32
    %1 = arith.extui %0 : i1 to i32
    %c0_i32_0 = arith.constant 0 : i32
    %2 = arith.cmpi ne, %1, %c0_i32_0 : i32
    scf.if %2 {
      %cst_10 = arith.constant 0.000000e+00 : f32
      %12 = vector.broadcast %cst_10 : f32 to vector<16x32xf32>
      %c0_11 = arith.constant 0 : index
      %c0_12 = arith.constant 0 : index
      %13 = vector.load %arg7[%c0_11, %c0_12] : memref<16x32xf32, #tpu.memory_space<vmem>>, vector<16x32xf32>
      tpu.vector_store %arg7[%c0_11, %c0_12], %12 {strides = array<i32>} : memref<16x32xf32, #tpu.memory_space<vmem>>, vector<16x32xf32>,
    } else {
    }
    %c0 = arith.constant 0 : index
    %c0_1 = arith.constant 0 : index
    %3 = vector.load %arg7[%c0, %c0_1] : memref<16x32xf32, #tpu.memory_space<vmem>>, vector<16x32xf32>
    %c0_2 = arith.constant 0 : index
    %c0_3 = arith.constant 0 : index
    %4 = vector.load %arg3[%c0_2, %c0_3] : memref<16x32xbf16, #tpu.memory_space<vmem>>, vector<16x32xbf16>
    %c0_4 = arith.constant 0 : index
    %c0_5 = arith.constant 0 : index
    %5 = vector.load %arg4[%c0_4, %c0_5] : memref<32x32xbf16, #tpu.memory_space<vmem>>, vector<32x32xbf16>
    %cst = arith.constant dense<0.000000e+00> : vector<16x32xf32>
    %6 = tpu.matmul %4, %5, %cst {dimension_numbers = #tpu.dot_dimension_numbers<[1], [0], [0], [1], [0, 0, 1, 1], [], []>} : vector<16x32xbf16>, vector<32x32xbf16>, vector<16x32xf32> -> vector<16x32xf32>
    %7 = arith.addf %3, %6 : vector<16x32xf32>
    %c0_6 = arith.constant 0 : index
    %c0_7 = arith.constant 0 : index
    %8 = vector.load %arg7[%c0_6, %c0_7] : memref<16x32xf32, #tpu.memory_space<vmem>>, vector<16x32xf32>
    tpu.vector_store %arg7[%c0_6, %c0_7], %7 {strides = array<i32>} : memref<16x32xf32, #tpu.memory_space<vmem>>, vector<16x32xf32>,
    %c0_i32_8 = arith.constant 0 : i32
    %9 = arith.cmpi eq, %arg2, %c0_i32_8 : i32
    %10 = arith.extui %9 : i1 to i32
    %c0_i32_9 = arith.constant 0 : i32
    %11 = arith.cmpi ne, %10, %c0_i32_9 : i32
    scf.if %11 {
      %c0_10 = arith.constant 0 : index
      %c0_11 = arith.constant 0 : index
      %12 = vector.load %arg7[%c0_10, %c0_11] : memref<16x32xf32, #tpu.memory_space<vmem>>, vector<16x32xf32>
      %c0_12 = arith.constant 0 : index
      %c0_13 = arith.constant 0 : index
      %13 = vector.load %arg5[%c0_12, %c0_13] : memref<1x32xf32, #tpu.memory_space<vmem>>, vector<1x32xf32>
      %14 = vector.broadcast %13 : vector<1x32xf32> to vector<16x32xf32>
      %15 = arith.addf %12, %14 : vector<16x32xf32>
      %c0_14 = arith.constant 0 : index
      %c0_15 = arith.constant 0 : index
      %16 = vector.load %arg6[%c0_14, %c0_15] : memref<16x32xf32, #tpu.memory_space<vmem>>, vector<16x32xf32>
      tpu.vector_store %arg6[%c0_14, %c0_15], %15 {strides = array<i32>} : memref<16x32xf32, #tpu.memory_space<vmem>>, vector<16x32xf32>,
    } else {
    }
    return
  }
  func.func @transform_0(%arg0: i32, %arg1: i32, %arg2: i32) -> (i32, i32) {
    %c0_i32 = arith.constant 0 : i32
    return %arg0, %arg2 : i32, i32
  }
  func.func @transform_1(%arg0: i32, %arg1: i32, %arg2: i32) -> (i32, i32) {
    %c0_i32 = arith.constant 0 : i32
    return %arg2, %arg1 : i32, i32
  }
  func.func @transform_2(%arg0: i32, %arg1: i32, %arg2: i32) -> (i32, i32) {
    %c0_i32 = arith.constant 0 : i32
    %c0_i32_0 = arith.constant 0 : i32
    return %c0_i32, %arg1 : i32, i32
  }
  func.func @transform_3(%arg0: i32, %arg1: i32, %arg2: i32) -> (i32, i32) {
    %c0_i32 = arith.constant 0 : i32
    return %arg0, %arg1 : i32, i32
  }
}

</mosaic_0001>

<llo_original>
// kernel: multi_head_attention_forward.5
$region0: #{multi_head_attention_forward.5}
  #allocation0 [shape = 'u32[]', space=smem, size = 0x4, offset = 0x4, fixed_abs, tag = 'smem constant byte address 0x4 - core index']
  #allocation1 [shape = 'u32[144,128]{1,0:T(1,128)}', space=vmem, size = 0x12000, scoped, tag = 'internal scratch']
  #allocation2 [shape = 'f32[16,32]{1,0:T(8,128)}', space=vmem, size = 0x2000, scoped, tag = 'scratch operand']
  %s0 = inlined_call_operand.vmem [shape: bf16[16,32], index: 0, kind: input, shape index: {}]
  %s1 = inlined_call_operand.vmem [shape: bf16[32,32], index: 1, kind: input, shape index: {}]
  %s2 = inlined_call_operand.vmem [shape: f32[1,32], index: 2, kind: input, shape index: {}]
  %s3 = inlined_call_operand.hbm [shape: f32[16,32], index: 3, kind: output, shape index: {}]
  %s4 = sld [smem:[#allocation0]]
  $region30: #{multi_head_attention_forward.5} parent=0
    _
  %s6 = ssub.s32 1, %s4
  %s7 = scalar_select 0, %s6, %s4
  $region1: #{multi_head_attention_forward.5} parent=0
    #allocation3 [shape = 'u8[8192]{0}', space=vmem, size = 0x2000, scoped, tag = 'output window, operand 0, single buffered']
    #allocation4 [shape = 's32[1]{0}', space=sflag, size = 0x4, scoped, tag = 'scoped memory for multi_head_attention_forward.5']
    %8 = vsyncpa [#allocation4], 0
    // Predicated region
    $region2: #{multi_head_attention_forward.5} parent=1 // pred_check
      _
    $region3: #{multi_head_attention_forward.5} parent=1 // pred_check_branch
      %10 = sbr.rel (0) target = $region5
    $region4: #{multi_head_attention_forward.5} parent=1 // pred_region
      _
    $region5: #{multi_head_attention_forward.5} parent=1 // pred_fallthru
      _
    // Predicated region
    $region6: #{multi_head_attention_forward.5} parent=1 // pred_check
      _
    $region7: #{multi_head_attention_forward.5} parent=1 // pred_check_branch
      %12 = sbr.rel (0) target = $region9
    $region8: #{multi_head_attention_forward.5} parent=1 // pred_region
      _
    $region9: #{multi_head_attention_forward.5} parent=1 // pred_fallthru
      _
    // Predicated region
    $region10: #{multi_head_attention_forward.5} parent=1 // pred_check
      _
    $region11: #{multi_head_attention_forward.5} parent=1 // pred_check_branch
      %14 = sbr.rel (0) target = $region13
    $region12: #{multi_head_attention_forward.5} parent=1 // pred_region
      _
    $region13: #{multi_head_attention_forward.5} parent=1 // pred_fallthru
      _
    %p16 = scmp.eq.s32.totalorder 0, 0
    // Predicated region
    $region14: #{multi_head_attention_forward.5} parent=1 // pred_check
      %p17 = pneg %p16
    $region15: #{multi_head_attention_forward.5} parent=1 // pred_check_branch
      %19 = sbr.rel (%p17) target = $region17
    $region16: #{multi_head_attention_forward.5} parent=1 // pred_region
      %vm20 = vcmask 261120
      %21 = vst.msk [vmem:[#allocation2] sm:$0xff] %vm20, 0.0
      %22 = vst.msk [vmem:[#allocation2 + $0x8] sm:$0xff] %vm20, 0.0
    $region17: #{multi_head_attention_forward.5} parent=1 // pred_fallthru
      _
    %v23 = vld [vmem:[#allocation2] sm:$0xff]
    %v24 = vld [vmem:[#allocation2 + $0x8] sm:$0xff]
    %v25 = vld [vmem:[%s0] sm:$0xf]
    %v26 = vld [vmem:[%s0 + $0x4] sm:$0xf]
    %v27 = vld [vmem:[%s1] sm:$0xf]
    %v28 = vld [vmem:[%s1 + $0x4] sm:$0xf]
    %v29 = vld [vmem:[%s1 + $0x8] sm:$0xf]
    %v30 = vld [vmem:[%s1 + $0xc] sm:$0xf]
    %v33 = vunpack.c.l.b16 %v25
    %v34 = vunpack.c.l.b16 %v26
    %v35 = vpack.c.b16 %v34, %v33
    %v40 = vunpack.c.l.b16 %v27
    %v41 = vunpack.c.l.b16 %v28
    %v42 = vunpack.c.l.b16 %v29
    %v43 = vunpack.c.l.b16 %v30
    %v44 = vpack.c.b16 %v41, %v40
    %v45 = vpack.c.b16 %v43, %v42
    %vm48 = vcmask 261120
    %v50 = vsel %vm48, %v35, 0
    %52 = vmatprep.subr.bf16.mxu0 0
    %53 = vmatpush1.bf16.msra.mxu0 %v44
    %54 = vmatprep.subr.bf16.mxu0 0
    %55 = vmatpush1.bf16.msra.mxu0 %v45
    %56 = vmatprep.subr.bf16.mxu0 0
    %57 = vmatpush1.bf16.msra.mxu0 0
    %58 = vmatprep.subr.bf16.mxu0 0
    %59 = vmatpush1.bf16.msra.mxu0 0
    %60 = vmatprep.subr.bf16.mxu0 0
    %61 = vmatpush1.bf16.msra.mxu0 0
    %62 = vmatprep.subr.bf16.mxu0 0
    %63 = vmatpush1.bf16.msra.mxu0 0
    %64 = vmatprep.subr.bf16.mxu0 0
    %65 = vmatpush1.bf16.msra.mxu0 0
    %66 = vmatprep.subr.bf16.mxu0 0
    %67 = vmatpush1.bf16.msra.mxu0 0
    %68 = vmatprep.subr.bf16.mxu0 0
    %69 = vmatpush1.bf16.msra.mxu0 0
    %70 = vmatprep.subr.bf16.mxu0 0
    %71 = vmatpush1.bf16.msra.mxu0 0
    %72 = vmatprep.subr.bf16.mxu0 0
    %73 = vmatpush1.bf16.msra.mxu0 0
    %74 = vmatprep.subr.bf16.mxu0 0
    %75 = vmatpush1.bf16.msra.mxu0 0
    %76 = vmatprep.subr.bf16.mxu0 0
    %77 = vmatpush1.bf16.msra.mxu0 0
    %78 = vmatprep.subr.bf16.mxu0 0
    %79 = vmatpush1.bf16.msra.mxu0 0
    %80 = vmatprep.subr.bf16.mxu0 0
    %81 = vmatpush1.bf16.msra.mxu0 0
    %82 = vmatprep.subr.bf16.mxu0 0
    %83 = vmatpush1.bf16.msra.mxu0 0
    %84 = vmatprep.mubr.bf16.mxu0 0
    %85 = vmatmul.mubr.bf16.gmra.mrb[0].mxu0 %v50
    %v86 = vpop.f32.mrb[0].mxu0
    %v87 = vadd.f32 0.0, %v86
    %v88 = vpop.f32.mrb[0].mxu0
    %v89 = vpop.f32.mrb[0].mxu0
    %v90 = vadd.f32 0.0, %v89
    %v91 = vpop.f32.mrb[0].mxu0
    %92 = vdwg.mxu0
    %v93 = vadd.f32 %v23, %v87
    %v94 = vadd.f32 %v24, %v90
    %95 = vst.msk [vmem:[#allocation2] sm:$0xff] %vm48, %v93
    %96 = vst.msk [vmem:[#allocation2 + $0x8] sm:$0xff] %vm48, %v94
    // Predicated region
    $region18: #{multi_head_attention_forward.5} parent=1 // pred_check
      %p97 = pneg %p16
    $region19: #{multi_head_attention_forward.5} parent=1 // pred_check_branch
      %99 = sbr.rel (%p97) target = $region21
    $region20: #{multi_head_attention_forward.5} parent=1 // pred_region
      %v100 = vld [vmem:[#allocation2] sm:$0xff]
      %v101 = vld [vmem:[#allocation2 + $0x8] sm:$0xff]
      %v102 = vld [vmem:[%s2] sm:$0x1]
      %v104 = vlaneseq
      %v105 = vshrl.u32 %v104, 7
      %v106 = vsub.s32 0, %v105
      %v107 = vrot.slane %v102, %v106
      %v109 = vadd.f32 %v100, %v107
      %v110 = vadd.f32 %v101, %v107
      %111 = vst.msk [vmem:[#allocation3] sm:$0xff] %vm48, %v109
      %112 = vst.msk [vmem:[#allocation3 + $0x8] sm:$0xff] %vm48, %v110
    $region21: #{multi_head_attention_forward.5} parent=1 // pred_fallthru
      _
    // Predicated region
    $region22: #{multi_head_attention_forward.5} parent=1 // pred_check
      _
    $region23: #{multi_head_attention_forward.5} parent=1 // pred_check_branch
      %114 = sbr.rel (0) target = $region25
    $region24: #{multi_head_attention_forward.5} parent=1 // pred_region
      %s116 = ssub.s32 256, 256
      %117 = vsyncadd [#allocation4], %s116
      %s118 = sshll.u32 [#allocation3], 4
      %s119 = int_to_ptr.vmem [resolvable:$true] %s118
      %124 = dma.vmem_to_hbm [thread:$0]  %s119, 256, %s3, [#allocation4], 128, 128, 8
    $region25: #{multi_head_attention_forward.5} parent=1 // pred_fallthru
      _
    // Predicated region
    $region26: #{multi_head_attention_forward.5} parent=1 // pred_check
      _
    $region27: #{multi_head_attention_forward.5} parent=1 // pred_check_branch
      %126 = sbr.rel (0) target = $region29
    $region28: #{multi_head_attention_forward.5} parent=1 // pred_region
      %127 = dma.done [#allocation4], 256
    $region29: #{multi_head_attention_forward.5} parent=1 // pred_fallthru
      _
    %128 = vsyncpa [#allocation4], 1

// kernel: multi_head_attention_forward.3
$region0: #{multi_head_attention_forward.3}
  #allocation0 [shape = 'u32[]', space=smem, size = 0x4, offset = 0x4, fixed_abs, tag = 'smem constant byte address 0x4 - core index']
  #allocation1 [shape = 'u32[144,128]{1,0:T(1,128)}', space=vmem, size = 0x12000, scoped, tag = 'internal scratch']
  #allocation2 [shape = 'f32[16,96]{1,0:T(8,128)}', space=vmem, size = 0x2000, scoped, tag = 'scratch operand']
  %s0 = inlined_call_operand.vmem [shape: bf16[16,32], index: 0, kind: input, shape index: {}]
  %s1 = inlined_call_operand.vmem [shape: bf16[32,96], index: 1, kind: input, shape index: {}]
  %s2 = inlined_call_operand.vmem [shape: f32[1,96], index: 2, kind: input, shape index: {}]
  %s3 = inlined_call_operand.vmem [shape: f32[16,96], index: 3, kind: output, shape index: {}]
  %s4 = sld [smem:[#allocation0]]
  $region30: #{multi_head_attention_forward.3} parent=0
    _
  %s6 = ssub.s32 1, %s4
  %s7 = scalar_select 0, %s6, %s4
  // Predicated region
  $region2: #{multi_head_attention_forward.3} parent=0 // pred_check
    _
  $region3: #{multi_head_attention_forward.3} parent=0 // pred_check_branch
    %9 = sbr.rel (0) target = $region5
  $region4: #{multi_head_attention_forward.3} parent=0 // pred_region
    _
  $region5: #{multi_head_attention_forward.3} parent=0 // pred_fallthru
    _
  // Predicated region
  $region6: #{multi_head_attention_forward.3} parent=0 // pred_check
    _
  $region7: #{multi_head_attention_forward.3} parent=0 // pred_check_branch
    %11 = sbr.rel (0) target = $region9
  $region8: #{multi_head_attention_forward.3} parent=0 // pred_region
    _
  $region9: #{multi_head_attention_forward.3} parent=0 // pred_fallthru
    _
  // Predicated region
  $region10: #{multi_head_attention_forward.3} parent=0 // pred_check
    _
  $region11: #{multi_head_attention_forward.3} parent=0 // pred_check_branch
    %13 = sbr.rel (0) target = $region13
  $region12: #{multi_head_attention_forward.3} parent=0 // pred_region
    _
  $region13: #{multi_head_attention_forward.3} parent=0 // pred_fallthru
    _
  %p15 = scmp.eq.s32.totalorder 0, 0
  // Predicated region
  $region14: #{multi_head_attention_forward.3} parent=0 // pred_check
    %p16 = pneg %p15
  $region15: #{multi_head_attention_forward.3} parent=0 // pred_check_branch
    %18 = sbr.rel (%p16) target = $region17
  $region16: #{multi_head_attention_forward.3} parent=0 // pred_region
    %vm19 = vcmask 785408
    %20 = vst.msk [vmem:[#allocation2] sm:$0xff] %vm19, 0.0
    %21 = vst.msk [vmem:[#allocation2 + $0x8] sm:$0xff] %vm19, 0.0
  $region17: #{multi_head_attention_forward.3} parent=0 // pred_fallthru
    _
  %v22 = vld [vmem:[#allocation2] sm:$0xff]
  %v23 = vld [vmem:[#allocation2 + $0x8] sm:$0xff]
  %v24 = vld [vmem:[%s0] sm:$0xf]
  %v25 = vld [vmem:[%s0 + $0x4] sm:$0xf]
  %v26 = vld [vmem:[%s1] sm:$0xf]
  %v27 = vld [vmem:[%s1 + $0x4] sm:$0xf]
  %v28 = vld [vmem:[%s1 + $0x8] sm:$0xf]
  %v29 = vld [vmem:[%s1 + $0xc] sm:$0xf]
  %v32 = vunpack.c.l.b16 %v24
  %v33 = vunpack.c.l.b16 %v25
  %v34 = vpack.c.b16 %v33, %v32
  %v39 = vunpack.c.l.b16 %v26
  %v40 = vunpack.c.l.b16 %v27
  %v41 = vunpack.c.l.b16 %v28
  %v42 = vunpack.c.l.b16 %v29
  %v43 = vpack.c.b16 %v40, %v39
  %v44 = vpack.c.b16 %v42, %v41
  %vm47 = vcmask 261120
  %v49 = vsel %vm47, %v34, 0
  %51 = vmatprep.subr.bf16.mxu0 0
  %52 = vmatpush1.bf16.msra.mxu0 %v43
  %53 = vmatprep.subr.bf16.mxu0 0
  %54 = vmatpush1.bf16.msra.mxu0 %v44
  %55 = vmatprep.subr.bf16.mxu0 0
  %56 = vmatpush1.bf16.msra.mxu0 0
  %57 = vmatprep.subr.bf16.mxu0 0
  %58 = vmatpush1.bf16.msra.mxu0 0
  %59 = vmatprep.subr.bf16.mxu0 0
  %60 = vmatpush1.bf16.msra.mxu0 0
  %61 = vmatprep.subr.bf16.mxu0 0
  %62 = vmatpush1.bf16.msra.mxu0 0
  %63 = vmatprep.subr.bf16.mxu0 0
  %64 = vmatpush1.bf16.msra.mxu0 0
  %65 = vmatprep.subr.bf16.mxu0 0
  %66 = vmatpush1.bf16.msra.mxu0 0
  %67 = vmatprep.subr.bf16.mxu0 0
  %68 = vmatpush1.bf16.msra.mxu0 0
  %69 = vmatprep.subr.bf16.mxu0 0
  %70 = vmatpush1.bf16.msra.mxu0 0
  %71 = vmatprep.subr.bf16.mxu0 0
  %72 = vmatpush1.bf16.msra.mxu0 0
  %73 = vmatprep.subr.bf16.mxu0 0
  %74 = vmatpush1.bf16.msra.mxu0 0
  %75 = vmatprep.subr.bf16.mxu0 0
  %76 = vmatpush1.bf16.msra.mxu0 0
  %77 = vmatprep.subr.bf16.mxu0 0
  %78 = vmatpush1.bf16.msra.mxu0 0
  %79 = vmatprep.subr.bf16.mxu0 0
  %80 = vmatpush1.bf16.msra.mxu0 0
  %81 = vmatprep.subr.bf16.mxu0 0
  %82 = vmatpush1.bf16.msra.mxu0 0
  %83 = vmatprep.mubr.bf16.mxu0 0
  %84 = vmatmul.mubr.bf16.gmra.mrb[0].mxu0 %v49
  %v85 = vpop.f32.mrb[0].mxu0
  %v86 = vadd.f32 0.0, %v85
  %v87 = vpop.f32.mrb[0].mxu0
  %v88 = vpop.f32.mrb[0].mxu0
  %v89 = vadd.f32 0.0, %v88
  %v90 = vpop.f32.mrb[0].mxu0
  %91 = vdwg.mxu0
  %v92 = vadd.f32 %v22, %v86
  %v93 = vadd.f32 %v23, %v89
  %vm94 = vcmask 785408
  %95 = vst.msk [vmem:[#allocation2] sm:$0xff] %vm94, %v92
  %96 = vst.msk [vmem:[#allocation2 + $0x8] sm:$0xff] %vm94, %v93
  // Predicated region
  $region18: #{multi_head_attention_forward.3} parent=0 // pred_check
    %p97 = pneg %p15
  $region19: #{multi_head_attention_forward.3} parent=0 // pred_check_branch
    %99 = sbr.rel (%p97) target = $region21
  $region20: #{multi_head_attention_forward.3} parent=0 // pred_region
    %v100 = vld [vmem:[#allocation2] sm:$0xff]
    %v101 = vld [vmem:[#allocation2 + $0x8] sm:$0xff]
    %v102 = vld [vmem:[%s2] sm:$0x1]
    %v104 = vlaneseq
    %v105 = vshrl.u32 %v104, 7
    %v106 = vsub.s32 0, %v105
    %v107 = vrot.slane %v102, %v106
    %v109 = vadd.f32 %v100, %v107
    %v110 = vadd.f32 %v101, %v107
    %111 = vst.msk [vmem:[%s3] sm:$0xff] %vm94, %v109
    %112 = vst.msk [vmem:[%s3 + $0x8] sm:$0xff] %vm94, %v110
  $region21: #{multi_head_attention_forward.3} parent=0 // pred_fallthru
    _
  // Predicated region
  $region22: #{multi_head_attention_forward.3} parent=0 // pred_check
    _
  $region23: #{multi_head_attention_forward.3} parent=0 // pred_check_branch
    %114 = sbr.rel (0) target = $region25
  $region24: #{multi_head_attention_forward.3} parent=0 // pred_region
    _
  $region25: #{multi_head_attention_forward.3} parent=0 // pred_fallthru
    _
  // Predicated region
  $region26: #{multi_head_attention_forward.3} parent=0 // pred_check
    _
  $region27: #{multi_head_attention_forward.3} parent=0 // pred_check_branch
    %116 = sbr.rel (0) target = $region29
  $region28: #{multi_head_attention_forward.3} parent=0 // pred_region
    _
  $region29: #{multi_head_attention_forward.3} parent=0 // pred_fallthru
    _

// kernel: multi_head_attention_forward.4
$region0: #{multi_head_attention_forward.4}
  #allocation0 [shape = 'u32[]', space=smem, size = 0x4, offset = 0x4, fixed_abs, tag = 'smem constant byte address 0x4 - core index']
  #allocation1 [shape = 'u32[144,128]{1,0:T(1,128)}', space=vmem, size = 0x12000, scoped, tag = 'internal scratch']
  %s0 = inlined_call_operand.vmem [shape: f32[2,8,32], index: 0, kind: input, shape index: {}]
  %s1 = inlined_call_operand.vmem [shape: f32[2,8,32], index: 1, kind: input, shape index: {}]
  %s2 = inlined_call_operand.vmem [shape: f32[2,8,32], index: 2, kind: input, shape index: {}]
  %s3 = inlined_call_operand.vmem [shape: f32[2,8,32], index: 3, kind: output, shape index: {0}]
  %s4 = inlined_call_operand.hbm [shape: f32[2,4,8,8], index: 4, kind: output, shape index: {1}]
  %5 = xla_tuple %s3, %s4
  %s6 = sld [smem:[#allocation0]]
  $region53: #{multi_head_attention_forward.4} parent=0
    _
  %s8 = ssub.s32 1, %s6
  %s9 = scalar_select 0, %s8, %s6
  $region1: #{multi_head_attention_forward.4} parent=0
    #allocation2 [shape = 'u8[32768]{0}', space=vmem, size = 0x8000, scoped, tag = 'output window, operand 1']
    #allocation3 [shape = 's32[2]{0}', space=sflag, size = 0x8, scoped, tag = 'scoped memory for multi_head_attention_forward.4']
    %10 = vsyncpa [#allocation3], 0
    %s11 = scalar_lea.sflag [#allocation3], 1
    %12 = vsyncpa %s11, 0
    loop: start=0, step=1, limit=4
    $region2: #{multi_head_attention_forward.4} parent=1 // loop_pre_header
      _
    $region3: #{multi_head_attention_forward.4} parent=1 // loop_header
      %s14 = sphi 0, %s18
      %p15 = scmp.ge.s32.totalorder %s14, 4
      %s24 = sphi 0, %s26
      %s27 = sphi 0, %s24
      %s28 = sphi 0, %s27
      %s44 = sphi 0, %s28
      %s50 = sphi 0, %s52
      %s53 = sphi 0, %s50
      %s54 = sphi 0, %s53
      %s70 = sphi 0, %s54
      %s76 = sphi 0, %s78
      %s79 = sphi 0, %s76
      %s80 = sphi 0, %s79
      %s96 = sphi 0, %s80
      %s102 = sphi 0, %s104
      %s105 = sphi 0, %s102
      %s106 = sphi 0, %s105
      %s122 = sphi 0, %s106
      %s128 = sphi 0, %s130
      %s131 = sphi 0, %s128
      %s132 = sphi 0, %s131
      %s148 = sphi 0, %s132
    $region4: #{multi_head_attention_forward.4} parent=1 // loop_header_branch
      %17 = sbr.rel (%p15) target = $region8
    $region5: #{multi_head_attention_forward.4} parent=1 // loop_body
      %s19 = ssub.s32 %s14, 1
      %s20 = ssub.s32 %s14, 2
      %s21 = sadd.s32 %s14, 1
      %s22 = ssub.s32 %s14, %s21
      %p23 = scmp.eq.s32.totalorder %s22, 0
      %s25 = sadd.s32 %s24, 1
      %s26 = scalar_select %p23, %s24, %s25
      %p29 = pneg %p23
      %p30 = scmp.eq.s32.totalorder %s14, 1
      %p31 = por %p29, %p30
      %p32 = scmp.ne.s32.totalorder %s24, %s27
      %p33 = scmp.eq.s32.totalorder %s14, 0
      %p34 = por %p32, %p33
      %p35 = scmp.ne.s32.totalorder %s24, %s27
      %p36 = scmp.eq.s32.totalorder %s19, 1
      %p37 = por %p35, %p36
      %p38 = scmp.ne.s32.totalorder %s27, %s28
      %p39 = scmp.eq.s32.totalorder %s19, 0
      %p40 = por %p38, %p39
      %p41 = scmp.ne.s32.totalorder %s27, %s28
      %p42 = scmp.eq.s32.totalorder %s20, 1
      %p43 = por %p41, %p42
      %p45 = scmp.ne.s32.totalorder %s28, %s44
      %p46 = scmp.eq.s32.totalorder %s20, 0
      %p47 = por %p45, %p46
      %s48 = ssub.s32 %s14, %s21
      %p49 = scmp.eq.s32.totalorder %s48, 0
      %s51 = sadd.s32 %s50, 1
      %s52 = scalar_select %p49, %s50, %s51
      %p55 = pneg %p49
      %p56 = scmp.eq.s32.totalorder %s14, 1
      %p57 = por %p55, %p56
      %p58 = scmp.ne.s32.totalorder %s50, %s53
      %p59 = scmp.eq.s32.totalorder %s14, 0
      %p60 = por %p58, %p59
      %p61 = scmp.ne.s32.totalorder %s50, %s53
      %p62 = scmp.eq.s32.totalorder %s19, 1
      %p63 = por %p61, %p62
      %p64 = scmp.ne.s32.totalorder %s53, %s54
      %p65 = scmp.eq.s32.totalorder %s19, 0
      %p66 = por %p64, %p65
      %p67 = scmp.ne.s32.totalorder %s53, %s54
      %p68 = scmp.eq.s32.totalorder %s20, 1
      %p69 = por %p67, %p68
      %p71 = scmp.ne.s32.totalorder %s54, %s70
      %p72 = scmp.eq.s32.totalorder %s20, 0
      %p73 = por %p71, %p72
      %s74 = ssub.s32 %s14, %s21
      %p75 = scmp.eq.s32.totalorder %s74, 0
      %s77 = sadd.s32 %s76, 1
      %s78 = scalar_select %p75, %s76, %s77
      %p81 = pneg %p75
      %p82 = scmp.eq.s32.totalorder %s14, 1
      %p83 = por %p81, %p82
      %p84 = scmp.ne.s32.totalorder %s76, %s79
      %p85 = scmp.eq.s32.totalorder %s14, 0
      %p86 = por %p84, %p85
      %p87 = scmp.ne.s32.totalorder %s76, %s79
      %p88 = scmp.eq.s32.totalorder %s19, 1
      %p89 = por %p87, %p88
      %p90 = scmp.ne.s32.totalorder %s79, %s80
      %p91 = scmp.eq.s32.totalorder %s19, 0
      %p92 = por %p90, %p91
      %p93 = scmp.ne.s32.totalorder %s79, %s80
      %p94 = scmp.eq.s32.totalorder %s20, 1
      %p95 = por %p93, %p94
      %p97 = scmp.ne.s32.totalorder %s80, %s96
      %p98 = scmp.eq.s32.totalorder %s20, 0
      %p99 = por %p97, %p98
      %s100 = ssub.s32 %s14, %s21
      %p101 = scmp.eq.s32.totalorder %s100, 0
      %s103 = sadd.s32 %s102, 1
      %s104 = scalar_select %p101, %s102, %s103
      %p107 = pneg %p101
      %p108 = scmp.eq.s32.totalorder %s14, 1
      %p109 = por %p107, %p108
      %p110 = scmp.ne.s32.totalorder %s102, %s105
      %p111 = scmp.eq.s32.totalorder %s14, 0
      %p112 = por %p110, %p111
      %p113 = scmp.ne.s32.totalorder %s102, %s105
      %p114 = scmp.eq.s32.totalorder %s19, 1
      %p115 = por %p113, %p114
      %p116 = scmp.ne.s32.totalorder %s105, %s106
      %p117 = scmp.eq.s32.totalorder %s19, 0
      %p118 = por %p116, %p117
      %p119 = scmp.ne.s32.totalorder %s105, %s106
      %p120 = scmp.eq.s32.totalorder %s20, 1
      %p121 = por %p119, %p120
      %p123 = scmp.ne.s32.totalorder %s106, %s122
      %p124 = scmp.eq.s32.totalorder %s20, 0
      %p125 = por %p123, %p124
      %s126 = ssub.s32 %s14, %s21
      %p127 = scmp.eq.s32.totalorder %s126, 0
      %s129 = sadd.s32 %s128, 1
      %s130 = scalar_select %p127, %s128, %s129
      %p133 = pneg %p127
      %p134 = scmp.eq.s32.totalorder %s14, 1
      %p135 = por %p133, %p134
      %p136 = scmp.ne.s32.totalorder %s128, %s131
      %p137 = scmp.eq.s32.totalorder %s14, 0
      %p138 = por %p136, %p137
      %p139 = scmp.ne.s32.totalorder %s128, %s131
      %p140 = scmp.eq.s32.totalorder %s19, 1
      %p141 = por %p139, %p140
      %p142 = scmp.ne.s32.totalorder %s131, %s132
      %p143 = scmp.eq.s32.totalorder %s19, 0
      %p144 = por %p142, %p143
      %p145 = scmp.ne.s32.totalorder %s131, %s132
      %p146 = scmp.eq.s32.totalorder %s20, 1
      %p147 = por %p145, %p146
      %p149 = scmp.ne.s32.totalorder %s132, %s148
      %p150 = scmp.eq.s32.totalorder %s20, 0
      %p151 = por %p149, %p150
      %p152 = scmp.le.s32.totalorder 1, %s14
      %p153 = scmp.lt.s32.totalorder %s14, 3
      %p154 = pnand %p152, %p153
      %p155 = pneg %p154
      // Predicated region
      $region9: #{multi_head_attention_forward.4} parent=5 // pred_check
        _
      $region10: #{multi_head_attention_forward.4} parent=5 // pred_check_branch
        %157 = sbr.rel (%p154) target = $region12
      $region11: #{multi_head_attention_forward.4} parent=5 // pred_region
        %s158 = ssub.s32 %s14, 1
      $region12: #{multi_head_attention_forward.4} parent=5 // pred_fallthru
        _
      %p159 = scmp.lt.s32.totalorder %s14, 2
      // Predicated region
      $region13: #{multi_head_attention_forward.4} parent=5 // pred_check
        %p160 = pneg %p159
      $region14: #{multi_head_attention_forward.4} parent=5 // pred_check_branch
        %162 = sbr.rel (%p160) target = $region16
      $region15: #{multi_head_attention_forward.4} parent=5 // pred_region
        // Predicated region
        $region17: #{multi_head_attention_forward.4} parent=15 // pred_check
          %p163 = pneg %p34
        $region18: #{multi_head_attention_forward.4} parent=15 // pred_check_branch
          %165 = sbr.rel (%p163) target = $region20
        $region19: #{multi_head_attention_forward.4} parent=15 // pred_region
          %p166 = scmp.lt.s32.totalorder %s14, 1
          %s167 = scalar_select %p166, %s14, 1
          %s168 = smul.addr %s167, 8
          %s169 = scalar_lea.vmem %s0, %s168
        $region20: #{multi_head_attention_forward.4} parent=15 // pred_fallthru
          _
        // Predicated region
        $region21: #{multi_head_attention_forward.4} parent=15 // pred_check
          %p170 = pneg %p60
        $region22: #{multi_head_attention_forward.4} parent=15 // pred_check_branch
          %172 = sbr.rel (%p170) target = $region24
        $region23: #{multi_head_attention_forward.4} parent=15 // pred_region
          %p173 = scmp.lt.s32.totalorder %s14, 1
          %s174 = scalar_select %p173, %s14, 1
          %s175 = smul.addr %s174, 8
          %s176 = scalar_lea.vmem %s1, %s175
        $region24: #{multi_head_attention_forward.4} parent=15 // pred_fallthru
          _
        // Predicated region
        $region25: #{multi_head_attention_forward.4} parent=15 // pred_check
          %p177 = pneg %p86
        $region26: #{multi_head_attention_forward.4} parent=15 // pred_check_branch
          %179 = sbr.rel (%p177) target = $region28
        $region27: #{multi_head_attention_forward.4} parent=15 // pred_region
          %p180 = scmp.lt.s32.totalorder %s14, 1
          %s181 = scalar_select %p180, %s14, 1
          %s182 = smul.addr %s181, 8
          %s183 = scalar_lea.vmem %s2, %s182
        $region28: #{multi_head_attention_forward.4} parent=15 // pred_fallthru
          _
      $region16: #{multi_head_attention_forward.4} parent=5 // pred_fallthru
        _
      %p184 = scmp.le.s32.totalorder 1, %s14
      %p185 = scmp.lt.s32.totalorder %s14, 3
      %p186 = pnand %p184, %p185
      %p187 = pneg %p186
      // Predicated region
      $region29: #{multi_head_attention_forward.4} parent=5 // pred_check
        _
      $region30: #{multi_head_attention_forward.4} parent=5 // pred_check_branch
        %189 = sbr.rel (%p186) target = $region32
      $region31: #{multi_head_attention_forward.4} parent=5 // pred_region
        %s190 = ssub.s32 %s14, 1
        %p191 = scmp.lt.s32.totalorder %s19, 1
        %s192 = scalar_select %p191, %s19, 1
        %s193 = smul.addr %s192, 8
        %s194 = scalar_lea.vmem %s0, %s193
        %p195 = pneg %p40
        %p196 = pneg %p37
        %p197 = scmp.lt.s32.totalorder %s19, 1
        %s198 = scalar_select %p197, %s19, 1
        %s199 = smul.addr %s198, 8
        %s200 = scalar_lea.vmem %s1, %s199
        %p201 = pneg %p66
        %p202 = pneg %p63
        %p203 = scmp.lt.s32.totalorder %s19, 1
        %s204 = scalar_select %p203, %s19, 1
        %s205 = smul.addr %s204, 8
        %s206 = scalar_lea.vmem %s2, %s205
        %p207 = pneg %p92
        %p208 = pneg %p89
        %p209 = pneg %p118
        %p210 = pneg %p115
        %p211 = scmp.lt.s32.totalorder %s19, 1
        %s212 = scalar_select %p211, %s19, 1
        %s213 = smul.addr %s212, 8
        %s214 = scalar_lea.vmem %s3, %s213
        %p215 = pneg %p144
        %p216 = pneg %p141
        %s217 = sand.u32 %s131, 1
        %s218 = scalar_lea.sflag [#allocation3], %s217
        %s219 = sand.u32 %s131, 1
        %s220 = smul.addr %s219, 32
        %s221 = scalar_lea.vmem [#allocation2], %s220
        %p222 = scmp.lt.s32.totalorder %s19, 1
        %s223 = scalar_select %p222, %s19, 1
        %s224 = smul.addr %s223, 8
        %s225 = scalar_lea.vmem %s0, %s224
        %p226 = scmp.lt.s32.totalorder %s19, 1
        %s227 = scalar_select %p226, %s19, 1
        %s228 = smul.addr %s227, 8
        %s229 = scalar_lea.vmem %s1, %s228
        %p230 = scmp.lt.s32.totalorder %s19, 1
        %s231 = scalar_select %p230, %s19, 1
        %s232 = smul.addr %s231, 8
        %s233 = scalar_lea.vmem %s2, %s232
        %p234 = scmp.lt.s32.totalorder %s19, 1
        %s235 = scalar_select %p234, %s19, 1
        %s236 = smul.addr %s235, 8
        %s237 = scalar_lea.vmem %s3, %s236
        %v239 = vld [vmem:[%s225] sm:$0xff]
        %v240 = vmul.f32 %v239, 0.35355338
        %v241 = vpack.c.bf16 %v240, %v240
        %v242 = vld [vmem:[%s229] sm:$0xff]
        %v243 = vpack.c.bf16 %v242, %v242
        %v244 = vld [vmem:[%s233] sm:$0xff]
        %v245 = vpack.c.bf16 %v244, %v244
        %vm246 = vcmask 64512
        %v248 = vsel %vm246, %v241, 0
        %v251 = vsel %vm246, %v243, 0
        %253 = vmatprep.subr.bf16.mxu0 0
        %254 = vmatpush1.bf16.xpose.msra.mxu0 %v251
        %255 = vmatprep.subr.bf16.mxu0 0
        %256 = vmatpush1.bf16.xpose.msra.mxu0 0
        %257 = vmatprep.subr.bf16.mxu0 0
        %258 = vmatpush1.bf16.xpose.msra.mxu0 0
        %259 = vmatprep.subr.bf16.mxu0 0
        %260 = vmatpush1.bf16.xpose.msra.mxu0 0
        %261 = vmatprep.subr.bf16.mxu0 0
        %262 = vmatpush1.bf16.xpose.msra.mxu0 0
        %263 = vmatprep.subr.bf16.mxu0 0
        %264 = vmatpush1.bf16.xpose.msra.mxu0 0
        %265 = vmatprep.subr.bf16.mxu0 0
        %266 = vmatpush1.bf16.xpose.msra.mxu0 0
        %267 = vmatprep.subr.bf16.mxu0 0
        %268 = vmatpush1.bf16.xpose.msra.mxu0 0
        %269 = vmatprep.subr.bf16.mxu0 0
        %270 = vmatpush1.bf16.xpose.msra.mxu0 0
        %271 = vmatprep.subr.bf16.mxu0 0
        %272 = vmatpush1.bf16.xpose.msra.mxu0 0
        %273 = vmatprep.subr.bf16.mxu0 0
        %274 = vmatpush1.bf16.xpose.msra.mxu0 0
        %275 = vmatprep.subr.bf16.mxu0 0
        %276 = vmatpush1.bf16.xpose.msra.mxu0 0
        %277 = vmatprep.subr.bf16.mxu0 0
        %278 = vmatpush1.bf16.xpose.msra.mxu0 0
        %279 = vmatprep.subr.bf16.mxu0 0
        %280 = vmatpush1.bf16.xpose.msra.mxu0 0
        %281 = vmatprep.subr.bf16.mxu0 0
        %282 = vmatpush1.bf16.xpose.msra.mxu0 0
        %283 = vmatprep.subr.bf16.mxu0 0
        %284 = vmatpush1.bf16.xpose.msra.mxu0 0
        %285 = vmatprep.mubr.bf16.mxu0 0
        %286 = vmatmul.mubr.bf16.gmra.mrb[0].mxu0 %v248
        %v287 = vpop.f32.mrb[0].mxu0
        %v288 = vadd.f32 0.0, %v287
        %v289 = vpop.f32.mrb[0].mxu0
        %v290 = vpop.f32.mrb[0].mxu0
        %v291 = vpop.f32.mrb[0].mxu0
        %292 = vdwg.mxu0
        %v293 = vmax.f32 %v288, -6000.0
        %v294 = vsel %vm246, %v293, -inf
        %295 = vmax.xlane.f32.xlu0 %v294
        %v296 = vpop.xlane.xlu0 %295
        %v297 = vsub.f32 %v293, %v296
        %v298 = vmul.f32 %v297, 1.442695
        %v299 = vpow.pop %v298
        %v300 = vsel %vm246, %v299, 0.0
        %301 = vadd.xlane.f32.xlu0 %v300
        %v302 = vpop.xlane.xlu0 %301
        %v303 = vrcp.pop %v302
        %v304 = vmul.f32 %v299, %v303
        %305 = vst.msk [vmem:[%s221] sm:$0xff] %vm246, %v304
        %v306 = vpack.c.bf16 %v304, %v304
        %v308 = vsel %vm246, %v306, 0
        %vm310 = vcmask 1043456
        %v312 = vsel %vm310, %v245, 0
        %314 = vmatprep.subr.bf16.mxu0 0
        %315 = vmatpush1.bf16.msra.mxu0 %v312
        %316 = vmatprep.subr.bf16.mxu0 0
        %317 = vmatpush1.bf16.msra.mxu0 0
        %318 = vmatprep.subr.bf16.mxu0 0
        %319 = vmatpush1.bf16.msra.mxu0 0
        %320 = vmatprep.subr.bf16.mxu0 0
        %321 = vmatpush1.bf16.msra.mxu0 0
        %322 = vmatprep.subr.bf16.mxu0 0
        %323 = vmatpush1.bf16.msra.mxu0 0
        %324 = vmatprep.subr.bf16.mxu0 0
        %325 = vmatpush1.bf16.msra.mxu0 0
        %326 = vmatprep.subr.bf16.mxu0 0
        %327 = vmatpush1.bf16.msra.mxu0 0
        %328 = vmatprep.subr.bf16.mxu0 0
        %329 = vmatpush1.bf16.msra.mxu0 0
        %330 = vmatprep.subr.bf16.mxu0 0
        %331 = vmatpush1.bf16.msra.mxu0 0
        %332 = vmatprep.subr.bf16.mxu0 0
        %333 = vmatpush1.bf16.msra.mxu0 0
        %334 = vmatprep.subr.bf16.mxu0 0
        %335 = vmatpush1.bf16.msra.mxu0 0
        %336 = vmatprep.subr.bf16.mxu0 0
        %337 = vmatpush1.bf16.msra.mxu0 0
        %338 = vmatprep.subr.bf16.mxu0 0
        %339 = vmatpush1.bf16.msra.mxu0 0
        %340 = vmatprep.subr.bf16.mxu0 0
        %341 = vmatpush1.bf16.msra.mxu0 0
        %342 = vmatprep.subr.bf16.mxu0 0
        %343 = vmatpush1.bf16.msra.mxu0 0
        %344 = vmatprep.subr.bf16.mxu0 0
        %345 = vmatpush1.bf16.msra.mxu0 0
        %346 = vmatprep.mubr.bf16.mxu0 0
        %347 = vmatmul.mubr.bf16.gmra.mrb[0].mxu0 %v308
        %v348 = vpop.f32.mrb[0].mxu0
        %v349 = vadd.f32 0.0, %v348
        %v350 = vpop.f32.mrb[0].mxu0
        %v351 = vpop.f32.mrb[0].mxu0
        %v352 = vpop.f32.mrb[0].mxu0
        %353 = vdwg.mxu0
        %354 = vst.msk [vmem:[%s237] sm:$0xff] %vm246, %v349
        %v355 = vld [vmem:[%s225] sm:$0xff]
        %v356 = vmul.f32 %v355, 0.35355338
        %v357 = vpack.c.bf16 %v356, %v356
        %v358 = vld [vmem:[%s229] sm:$0xff]
        %v359 = vpack.c.bf16 %v358, %v358
        %v360 = vld [vmem:[%s233] sm:$0xff]
        %v361 = vpack.c.bf16 %v360, %v360
        %363 = vrot.lane.b32.xlu0 %v357, 120
        %v364 = vpop.permute.xlu0 %363
        %366 = vrot.lane.b32.xlu0 %v359, 120
        %v367 = vpop.permute.xlu0 %366
        %v369 = vsel %vm246, %v364, 0
        %v372 = vsel %vm246, %v367, 0
        %374 = vmatprep.subr.bf16.mxu0 0
        %375 = vmatpush1.bf16.xpose.msra.mxu0 %v372
        %376 = vmatprep.subr.bf16.mxu0 0
        %377 = vmatpush1.bf16.xpose.msra.mxu0 0
        %378 = vmatprep.subr.bf16.mxu0 0
        %379 = vmatpush1.bf16.xpose.msra.mxu0 0
        %380 = vmatprep.subr.bf16.mxu0 0
        %381 = vmatpush1.bf16.xpose.msra.mxu0 0
        %382 = vmatprep.subr.bf16.mxu0 0
        %383 = vmatpush1.bf16.xpose.msra.mxu0 0
        %384 = vmatprep.subr.bf16.mxu0 0
        %385 = vmatpush1.bf16.xpose.msra.mxu0 0
        %386 = vmatprep.subr.bf16.mxu0 0
        %387 = vmatpush1.bf16.xpose.msra.mxu0 0
        %388 = vmatprep.subr.bf16.mxu0 0
        %389 = vmatpush1.bf16.xpose.msra.mxu0 0
        %390 = vmatprep.subr.bf16.mxu0 0
        %391 = vmatpush1.bf16.xpose.msra.mxu0 0
        %392 = vmatprep.subr.bf16.mxu0 0
        %393 = vmatpush1.bf16.xpose.msra.mxu0 0
        %394 = vmatprep.subr.bf16.mxu0 0
        %395 = vmatpush1.bf16.xpose.msra.mxu0 0
        %396 = vmatprep.subr.bf16.mxu0 0
        %397 = vmatpush1.bf16.xpose.msra.mxu0 0
        %398 = vmatprep.subr.bf16.mxu0 0
        %399 = vmatpush1.bf16.xpose.msra.mxu0 0
        %400 = vmatprep.subr.bf16.mxu0 0
        %401 = vmatpush1.bf16.xpose.msra.mxu0 0
        %402 = vmatprep.subr.bf16.mxu0 0
        %403 = vmatpush1.bf16.xpose.msra.mxu0 0
        %404 = vmatprep.subr.bf16.mxu0 0
        %405 = vmatpush1.bf16.xpose.msra.mxu0 0
        %406 = vmatprep.mubr.bf16.mxu0 0
        %407 = vmatmul.mubr.bf16.gmra.mrb[0].mxu0 %v369
        %v408 = vpop.f32.mrb[0].mxu0
        %v409 = vadd.f32 0.0, %v408
        %v410 = vpop.f32.mrb[0].mxu0
        %v411 = vpop.f32.mrb[0].mxu0
        %v412 = vpop.f32.mrb[0].mxu0
        %413 = vdwg.mxu0
        %v414 = vmax.f32 %v409, -6000.0
        %v415 = vsel %vm246, %v414, -inf
        %416 = vmax.xlane.f32.xlu0 %v415
        %v417 = vpop.xlane.xlu0 %416
        %v418 = vsub.f32 %v414, %v417
        %v419 = vmul.f32 %v418, 1.442695
        %v420 = vpow.pop %v419
        %v421 = vsel %vm246, %v420, 0.0
        %422 = vadd.xlane.f32.xlu0 %v421
        %v423 = vpop.xlane.xlu0 %422
        %v424 = vrcp.pop %v423
        %v425 = vmul.f32 %v420, %v424
        %s426 = scalar_lea.vmem %s221, 8 [#allocation2]
        %427 = vst.msk [vmem:[%s426] sm:$0xff] %vm246, %v425
        %v428 = vpack.c.bf16 %v425, %v425
        %430 = vrot.lane.b32.xlu0 %v361, 120
        %v431 = vpop.permute.xlu0 %430
        %v433 = vsel %vm246, %v428, 0
        %v436 = vsel %vm310, %v431, 0
        %438 = vmatprep.subr.bf16.mxu0 0
        %439 = vmatpush1.bf16.msra.mxu0 %v436
        %440 = vmatprep.subr.bf16.mxu0 0
        %441 = vmatpush1.bf16.msra.mxu0 0
        %442 = vmatprep.subr.bf16.mxu0 0
        %443 = vmatpush1.bf16.msra.mxu0 0
        %444 = vmatprep.subr.bf16.mxu0 0
        %445 = vmatpush1.bf16.msra.mxu0 0
        %446 = vmatprep.subr.bf16.mxu0 0
        %447 = vmatpush1.bf16.msra.mxu0 0
        %448 = vmatprep.subr.bf16.mxu0 0
        %449 = vmatpush1.bf16.msra.mxu0 0
        %450 = vmatprep.subr.bf16.mxu0 0
        %451 = vmatpush1.bf16.msra.mxu0 0
        %452 = vmatprep.subr.bf16.mxu0 0
        %453 = vmatpush1.bf16.msra.mxu0 0
        %454 = vmatprep.subr.bf16.mxu0 0
        %455 = vmatpush1.bf16.msra.mxu0 0
        %456 = vmatprep.subr.bf16.mxu0 0
        %457 = vmatpush1.bf16.msra.mxu0 0
        %458 = vmatprep.subr.bf16.mxu0 0
        %459 = vmatpush1.bf16.msra.mxu0 0
        %460 = vmatprep.subr.bf16.mxu0 0
        %461 = vmatpush1.bf16.msra.mxu0 0
        %462 = vmatprep.subr.bf16.mxu0 0
        %463 = vmatpush1.bf16.msra.mxu0 0
        %464 = vmatprep.subr.bf16.mxu0 0
        %465 = vmatpush1.bf16.msra.mxu0 0
        %466 = vmatprep.subr.bf16.mxu0 0
        %467 = vmatpush1.bf16.msra.mxu0 0
        %468 = vmatprep.subr.bf16.mxu0 0
        %469 = vmatpush1.bf16.msra.mxu0 0
        %470 = vmatprep.mubr.bf16.mxu0 0
        %471 = vmatmul.mubr.bf16.gmra.mrb[0].mxu0 %v433
        %v472 = vpop.f32.mrb[0].mxu0
        %v473 = vadd.f32 0.0, %v472
        %v474 = vpop.f32.mrb[0].mxu0
        %v475 = vpop.f32.mrb[0].mxu0
        %v476 = vpop.f32.mrb[0].mxu0
        %477 = vdwg.mxu0
        %479 = vrot.lane.b32.xlu0 %v473, 8
        %v480 = vpop.permute.xlu0 %479
        %vm482 = vcmask 130112
        %483 = vst.msk [vmem:[%s237] sm:$0xff] %vm482, %v480
        %v484 = vld [vmem:[%s225] sm:$0xff]
        %v485 = vmul.f32 %v484, 0.35355338
        %v486 = vpack.c.bf16 %v485, %v485
        %v487 = vld [vmem:[%s229] sm:$0xff]
        %v488 = vpack.c.bf16 %v487, %v487
        %v489 = vld [vmem:[%s233] sm:$0xff]
        %v490 = vpack.c.bf16 %v489, %v489
        %492 = vrot.lane.b32.xlu0 %v486, 112
        %v493 = vpop.permute.xlu0 %492
        %495 = vrot.lane.b32.xlu0 %v488, 112
        %v496 = vpop.permute.xlu0 %495
        %v498 = vsel %vm246, %v493, 0
        %v501 = vsel %vm246, %v496, 0
        %503 = vmatprep.subr.bf16.mxu0 0
        %504 = vmatpush1.bf16.xpose.msra.mxu0 %v501
        %505 = vmatprep.subr.bf16.mxu0 0
        %506 = vmatpush1.bf16.xpose.msra.mxu0 0
        %507 = vmatprep.subr.bf16.mxu0 0
        %508 = vmatpush1.bf16.xpose.msra.mxu0 0
        %509 = vmatprep.subr.bf16.mxu0 0
        %510 = vmatpush1.bf16.xpose.msra.mxu0 0
        %511 = vmatprep.subr.bf16.mxu0 0
        %512 = vmatpush1.bf16.xpose.msra.mxu0 0
        %513 = vmatprep.subr.bf16.mxu0 0
        %514 = vmatpush1.bf16.xpose.msra.mxu0 0
        %515 = vmatprep.subr.bf16.mxu0 0
        %516 = vmatpush1.bf16.xpose.msra.mxu0 0
        %517 = vmatprep.subr.bf16.mxu0 0
        %518 = vmatpush1.bf16.xpose.msra.mxu0 0
        %519 = vmatprep.subr.bf16.mxu0 0
        %520 = vmatpush1.bf16.xpose.msra.mxu0 0
        %521 = vmatprep.subr.bf16.mxu0 0
        %522 = vmatpush1.bf16.xpose.msra.mxu0 0
        %523 = vmatprep.subr.bf16.mxu0 0
        %524 = vmatpush1.bf16.xpose.msra.mxu0 0
        %525 = vmatprep.subr.bf16.mxu0 0
        %526 = vmatpush1.bf16.xpose.msra.mxu0 0
        %527 = vmatprep.subr.bf16.mxu0 0
        %528 = vmatpush1.bf16.xpose.msra.mxu0 0
        %529 = vmatprep.subr.bf16.mxu0 0
        %530 = vmatpush1.bf16.xpose.msra.mxu0 0
        %531 = vmatprep.subr.bf16.mxu0 0
        %532 = vmatpush1.bf16.xpose.msra.mxu0 0
        %533 = vmatprep.subr.bf16.mxu0 0
        %534 = vmatpush1.bf16.xpose.msra.mxu0 0
        %535 = vmatprep.mubr.bf16.mxu0 0
        %536 = vmatmul.mubr.bf16.gmra.mrb[0].mxu0 %v498
        %v537 = vpop.f32.mrb[0].mxu0
        %v538 = vadd.f32 0.0, %v537
        %v539 = vpop.f32.mrb[0].mxu0
        %v540 = vpop.f32.mrb[0].mxu0
        %v541 = vpop.f32.mrb[0].mxu0
        %542 = vdwg.mxu0
        %v543 = vmax.f32 %v538, -6000.0
        %v544 = vsel %vm246, %v543, -inf
        %545 = vmax.xlane.f32.xlu0 %v544
        %v546 = vpop.xlane.xlu0 %545
        %v547 = vsub.f32 %v543, %v546
        %v548 = vmul.f32 %v547, 1.442695
        %v549 = vpow.pop %v548
        %v550 = vsel %vm246, %v549, 0.0
        %551 = vadd.xlane.f32.xlu0 %v550
        %v552 = vpop.xlane.xlu0 %551
        %v553 = vrcp.pop %v552
        %v554 = vmul.f32 %v549, %v553
        %s555 = scalar_lea.vmem %s221, 16 [#allocation2]
        %556 = vst.msk [vmem:[%s555] sm:$0xff] %vm246, %v554
        %v557 = vpack.c.bf16 %v554, %v554
        %559 = vrot.lane.b32.xlu0 %v490, 112
        %v560 = vpop.permute.xlu0 %559
        %v562 = vsel %vm246, %v557, 0
        %v565 = vsel %vm310, %v560, 0
        %567 = vmatprep.subr.bf16.mxu0 0
        %568 = vmatpush1.bf16.msra.mxu0 %v565
        %569 = vmatprep.subr.bf16.mxu0 0
        %570 = vmatpush1.bf16.msra.mxu0 0
        %571 = vmatprep.subr.bf16.mxu0 0
        %572 = vmatpush1.bf16.msra.mxu0 0
        %573 = vmatprep.subr.bf16.mxu0 0
        %574 = vmatpush1.bf16.msra.mxu0 0
        %575 = vmatprep.subr.bf16.mxu0 0
        %576 = vmatpush1.bf16.msra.mxu0 0
        %577 = vmatprep.subr.bf16.mxu0 0
        %578 = vmatpush1.bf16.msra.mxu0 0
        %579 = vmatprep.subr.bf16.mxu0 0
        %580 = vmatpush1.bf16.msra.mxu0 0
        %581 = vmatprep.subr.bf16.mxu0 0
        %582 = vmatpush1.bf16.msra.mxu0 0
        %583 = vmatprep.subr.bf16.mxu0 0
        %584 = vmatpush1.bf16.msra.mxu0 0
        %585 = vmatprep.subr.bf16.mxu0 0
        %586 = vmatpush1.bf16.msra.mxu0 0
        %587 = vmatprep.subr.bf16.mxu0 0
        %588 = vmatpush1.bf16.msra.mxu0 0
        %589 = vmatprep.subr.bf16.mxu0 0
        %590 = vmatpush1.bf16.msra.mxu0 0
        %591 = vmatprep.subr.bf16.mxu0 0
        %592 = vmatpush1.bf16.msra.mxu0 0
        %593 = vmatprep.subr.bf16.mxu0 0
        %594 = vmatpush1.bf16.msra.mxu0 0
        %595 = vmatprep.subr.bf16.mxu0 0
        %596 = vmatpush1.bf16.msra.mxu0 0
        %597 = vmatprep.subr.bf16.mxu0 0
        %598 = vmatpush1.bf16.msra.mxu0 0
        %599 = vmatprep.mubr.bf16.mxu0 0
        %600 = vmatmul.mubr.bf16.gmra.mrb[0].mxu0 %v562
        %v601 = vpop.f32.mrb[0].mxu0
        %v602 = vadd.f32 0.0, %v601
        %v603 = vpop.f32.mrb[0].mxu0
        %v604 = vpop.f32.mrb[0].mxu0
        %v605 = vpop.f32.mrb[0].mxu0
        %606 = vdwg.mxu0
        %608 = vrot.lane.b32.xlu0 %v602, 16
        %v609 = vpop.permute.xlu0 %608
        %vm611 = vcmask 195712
        %612 = vst.msk [vmem:[%s237] sm:$0xff] %vm611, %v609
        %v613 = vld [vmem:[%s225] sm:$0xff]
        %v614 = vmul.f32 %v613, 0.35355338
        %v615 = vpack.c.bf16 %v614, %v614
        %v616 = vld [vmem:[%s229] sm:$0xff]
        %v617 = vpack.c.bf16 %v616, %v616
        %v618 = vld [vmem:[%s233] sm:$0xff]
        %v619 = vpack.c.bf16 %v618, %v618
        %621 = vrot.lane.b32.xlu0 %v615, 104
        %v622 = vpop.permute.xlu0 %621
        %624 = vrot.lane.b32.xlu0 %v617, 104
        %v625 = vpop.permute.xlu0 %624
        %v627 = vsel %vm246, %v622, 0
        %v630 = vsel %vm246, %v625, 0
        %632 = vmatprep.subr.bf16.mxu0 0
        %633 = vmatpush1.bf16.xpose.msra.mxu0 %v630
        %634 = vmatprep.subr.bf16.mxu0 0
        %635 = vmatpush1.bf16.xpose.msra.mxu0 0
        %636 = vmatprep.subr.bf16.mxu0 0
        %637 = vmatpush1.bf16.xpose.msra.mxu0 0
        %638 = vmatprep.subr.bf16.mxu0 0
        %639 = vmatpush1.bf16.xpose.msra.mxu0 0
        %640 = vmatprep.subr.bf16.mxu0 0
        %641 = vmatpush1.bf16.xpose.msra.mxu0 0
        %642 = vmatprep.subr.bf16.mxu0 0
        %643 = vmatpush1.bf16.xpose.msra.mxu0 0
        %644 = vmatprep.subr.bf16.mxu0 0
        %645 = vmatpush1.bf16.xpose.msra.mxu0 0
        %646 = vmatprep.subr.bf16.mxu0 0
        %647 = vmatpush1.bf16.xpose.msra.mxu0 0
        %648 = vmatprep.subr.bf16.mxu0 0
        %649 = vmatpush1.bf16.xpose.msra.mxu0 0
        %650 = vmatprep.subr.bf16.mxu0 0
        %651 = vmatpush1.bf16.xpose.msra.mxu0 0
        %652 = vmatprep.subr.bf16.mxu0 0
        %653 = vmatpush1.bf16.xpose.msra.mxu0 0
        %654 = vmatprep.subr.bf16.mxu0 0
        %655 = vmatpush1.bf16.xpose.msra.mxu0 0
        %656 = vmatprep.subr.bf16.mxu0 0
        %657 = vmatpush1.bf16.xpose.msra.mxu0 0
        %658 = vmatprep.subr.bf16.mxu0 0
        %659 = vmatpush1.bf16.xpose.msra.mxu0 0
        %660 = vmatprep.subr.bf16.mxu0 0
        %661 = vmatpush1.bf16.xpose.msra.mxu0 0
        %662 = vmatprep.subr.bf16.mxu0 0
        %663 = vmatpush1.bf16.xpose.msra.mxu0 0
        %664 = vmatprep.mubr.bf16.mxu0 0
        %665 = vmatmul.mubr.bf16.gmra.mrb[0].mxu0 %v627
        %v666 = vpop.f32.mrb[0].mxu0
        %v667 = vadd.f32 0.0, %v666
        %v668 = vpop.f32.mrb[0].mxu0
        %v669 = vpop.f32.mrb[0].mxu0
        %v670 = vpop.f32.mrb[0].mxu0
        %671 = vdwg.mxu0
        %v672 = vmax.f32 %v667, -6000.0
        %v673 = vsel %vm246, %v672, -inf
        %674 = vmax.xlane.f32.xlu0 %v673
        %v675 = vpop.xlane.xlu0 %674
        %v676 = vsub.f32 %v672, %v675
        %v677 = vmul.f32 %v676, 1.442695
        %v678 = vpow.pop %v677
        %v679 = vsel %vm246, %v678, 0.0
        %680 = vadd.xlane.f32.xlu0 %v679
        %v681 = vpop.xlane.xlu0 %680
        %v682 = vrcp.pop %v681
        %v683 = vmul.f32 %v678, %v682
        %s684 = scalar_lea.vmem %s221, 24 [#allocation2]
        %685 = vst.msk [vmem:[%s684] sm:$0xff] %vm246, %v683
        %v686 = vpack.c.bf16 %v683, %v683
        %688 = vrot.lane.b32.xlu0 %v619, 104
        %v689 = vpop.permute.xlu0 %688
        %v691 = vsel %vm246, %v686, 0
        %v694 = vsel %vm310, %v689, 0
        %696 = vmatprep.subr.bf16.mxu0 0
        %697 = vmatpush1.bf16.msra.mxu0 %v694
        %698 = vmatprep.subr.bf16.mxu0 0
        %699 = vmatpush1.bf16.msra.mxu0 0
        %700 = vmatprep.subr.bf16.mxu0 0
        %701 = vmatpush1.bf16.msra.mxu0 0
        %702 = vmatprep.subr.bf16.mxu0 0
        %703 = vmatpush1.bf16.msra.mxu0 0
        %704 = vmatprep.subr.bf16.mxu0 0
        %705 = vmatpush1.bf16.msra.mxu0 0
        %706 = vmatprep.subr.bf16.mxu0 0
        %707 = vmatpush1.bf16.msra.mxu0 0
        %708 = vmatprep.subr.bf16.mxu0 0
        %709 = vmatpush1.bf16.msra.mxu0 0
        %710 = vmatprep.subr.bf16.mxu0 0
        %711 = vmatpush1.bf16.msra.mxu0 0
        %712 = vmatprep.subr.bf16.mxu0 0
        %713 = vmatpush1.bf16.msra.mxu0 0
        %714 = vmatprep.subr.bf16.mxu0 0
        %715 = vmatpush1.bf16.msra.mxu0 0
        %716 = vmatprep.subr.bf16.mxu0 0
        %717 = vmatpush1.bf16.msra.mxu0 0
        %718 = vmatprep.subr.bf16.mxu0 0
        %719 = vmatpush1.bf16.msra.mxu0 0
        %720 = vmatprep.subr.bf16.mxu0 0
        %721 = vmatpush1.bf16.msra.mxu0 0
        %722 = vmatprep.subr.bf16.mxu0 0
        %723 = vmatpush1.bf16.msra.mxu0 0
        %724 = vmatprep.subr.bf16.mxu0 0
        %725 = vmatpush1.bf16.msra.mxu0 0
        %726 = vmatprep.subr.bf16.mxu0 0
        %727 = vmatpush1.bf16.msra.mxu0 0
        %728 = vmatprep.mubr.bf16.mxu0 0
        %729 = vmatmul.mubr.bf16.gmra.mrb[0].mxu0 %v691
        %v730 = vpop.f32.mrb[0].mxu0
        %v731 = vadd.f32 0.0, %v730
        %v732 = vpop.f32.mrb[0].mxu0
        %v733 = vpop.f32.mrb[0].mxu0
        %v734 = vpop.f32.mrb[0].mxu0
        %735 = vdwg.mxu0
        %737 = vrot.lane.b32.xlu0 %v731, 24
        %v738 = vpop.permute.xlu0 %737
        %vm740 = vcmask 261312
        %741 = vst.msk [vmem:[%s237] sm:$0xff] %vm740, %v738
        %p742 = scmp.lt.s32.totalorder %s19, 1
        %s743 = scalar_select %p742, %s19, 1
        %s744 = smul.addr %s743, 8
        %s745 = scalar_lea.vmem %s3, %s744
        %s746 = sand.u32 %s131, 1
        %s747 = scalar_lea.sflag [#allocation3], %s746
        %s748 = sand.u32 %s131, 1
        %s749 = smul.addr %s748, 32
        %s750 = scalar_lea.vmem [#allocation2], %s749
        // Predicated region
        $region33: #{multi_head_attention_forward.4} parent=31 // pred_check
          %p751 = pneg %p115
        $region34: #{multi_head_attention_forward.4} parent=31 // pred_check_branch
          %753 = sbr.rel (%p751) target = $region36
        $region35: #{multi_head_attention_forward.4} parent=31 // pred_region
          _
        $region36: #{multi_head_attention_forward.4} parent=31 // pred_fallthru
          _
        // Predicated region
        $region37: #{multi_head_attention_forward.4} parent=31 // pred_check
          %p754 = pneg %p141
        $region38: #{multi_head_attention_forward.4} parent=31 // pred_check_branch
          %756 = sbr.rel (%p754) target = $region40
        $region39: #{multi_head_attention_forward.4} parent=31 // pred_region
          %s758 = ssub.s32 512, 512
          %759 = vsyncadd %s747, %s758
          %s760 = smul.addr %s19, 4
          %s761 = smul.addr %s760, 128
          %s762 = scalar_lea.hbm %s4, %s761
          %s763 = sshll.u32 %s750, 4
          %s764 = int_to_ptr.vmem [resolvable:$true] %s763
          %769 = dma.vmem_to_hbm [thread:$0]  %s764, 512, %s762, %s747, 128, 128, 8
        $region40: #{multi_head_attention_forward.4} parent=31 // pred_fallthru
          _
      $region32: #{multi_head_attention_forward.4} parent=5 // pred_fallthru
        _
      %p770 = scmp.le.s32.totalorder 2, %s14
      // Predicated region
      $region41: #{multi_head_attention_forward.4} parent=5 // pred_check
        %p771 = pneg %p770
      $region42: #{multi_head_attention_forward.4} parent=5 // pred_check_branch
        %773 = sbr.rel (%p771) target = $region44
      $region43: #{multi_head_attention_forward.4} parent=5 // pred_region
        %s774 = ssub.s32 %s14, 2
        // Predicated region
        $region45: #{multi_head_attention_forward.4} parent=43 // pred_check
          %p775 = pneg %p121
        $region46: #{multi_head_attention_forward.4} parent=43 // pred_check_branch
          %777 = sbr.rel (%p775) target = $region48
        $region47: #{multi_head_attention_forward.4} parent=43 // pred_region
          %p778 = scmp.lt.s32.totalorder %s20, 1
          %s779 = scalar_select %p778, %s20, 1
          %s780 = smul.addr %s779, 8
          %s781 = scalar_lea.vmem %s3, %s780
        $region48: #{multi_head_attention_forward.4} parent=43 // pred_fallthru
          _
        // Predicated region
        $region49: #{multi_head_attention_forward.4} parent=43 // pred_check
          %p782 = pneg %p147
        $region50: #{multi_head_attention_forward.4} parent=43 // pred_check_branch
          %784 = sbr.rel (%p782) target = $region52
        $region51: #{multi_head_attention_forward.4} parent=43 // pred_region
          %s785 = sand.u32 %s132, 1
          %s786 = scalar_lea.sflag [#allocation3], %s785
          %s787 = sand.u32 %s132, 1
          %s788 = smul.addr %s787, 32
          %s789 = scalar_lea.vmem [#allocation2], %s788
          %790 = dma.done %s786, 512
        $region52: #{multi_head_attention_forward.4} parent=43 // pred_fallthru
          _
      $region44: #{multi_head_attention_forward.4} parent=5 // pred_fallthru
        _
    $region6: #{multi_head_attention_forward.4} parent=1 // loop_footer
      %s18 = sadd.s32 1, %s14
    $region7: #{multi_head_attention_forward.4} parent=1 // loop_footer_branch
      %13 = sbr.rel target = $region3
    $region8: #{multi_head_attention_forward.4} parent=1 // loop_exit
      _
    %791 = vsyncpa [#allocation3], 1
    %s792 = scalar_lea.sflag [#allocation3], 1
    %793 = vsyncpa %s792, 1

</llo_original>
